<compile_context>
chip_gen: v7x
topology: tpu7x:2x2x1
jax: 0.10.0
libtpu: 0.0.40
codegen_flags: <defaults>
</compile_context>

<pallas_src>
import functools
import numpy as np
import jax
import jax.numpy as jnp
from jax.experimental import pallas as pl
from jax.experimental.pallas import tpu as pltpu


def mha_kernel(q_ref, k_ref, v_ref, wq_ref, wk_ref, wv_ref, wo_ref, bo_ref,
               g_ref, b_ref, out_ref, *, n_heads, k_size, v_size, eps,
               compute_dtype, approx_recip):
    """One grid step: a tile of `bt` batch elements, full q_len / seq_len."""
    q_in = q_ref[...]                                  # (bt, q_len, h) io dtype
    residual = q_in.astype(jnp.float32)

    # Fused-head projections straight into the MXU operand dtype.  The
    # 1/sqrt(k_size) scaling is folded into Wq host-side, so this is one
    # full-width matmul per tensor and no post-hoc scaling pass.
    qh = jnp.einsum('bqh,hf->bqf', q_in.astype(compute_dtype), wq_ref[...],
                    preferred_element_type=compute_dtype)
    kh = jnp.einsum('bsh,hf->bsf', k_ref[...].astype(compute_dtype), wk_ref[...],
                    preferred_element_type=compute_dtype)
    vh = jnp.einsum('bsh,hf->bsf', v_ref[...].astype(compute_dtype), wv_ref[...],
                    preferred_element_type=compute_dtype)

    heads = []
    for h in range(n_heads):                           # small static unroll
        qh_h = qh[:, :, h * k_size:(h + 1) * k_size]
        kh_h = kh[:, :, h * k_size:(h + 1) * k_size]
        vh_h = vh[:, :, h * v_size:(h + 1) * v_size]

        # Scores: contract the shared k dim directly (no explicit K^T).
        s = jnp.einsum('bqk,bsk->bqs', qh_h, kh_h,
                       preferred_element_type=jnp.float32)
        # TODO(synk): optional boolean attention mask (-inf fill) would go here.

        # Numerically stable softmax over the last dim, f32 elementwise
        # (safe on v5e: no bf16 VPU/EUP).  Reciprocal goes to the EUP slot.
        s = s - jnp.max(s, axis=-1, keepdims=True)
        p = jnp.exp(s)
        p = p * pl.reciprocal(jnp.sum(p, axis=-1, keepdims=True),
                              approx=approx_recip)

        heads.append(jnp.einsum('bqs,bsv->bqv', p.astype(compute_dtype), vh_h,
                                preferred_element_type=jnp.float32))

    # Head concat along lanes (XLU work in a mostly-free slot), then ONE output
    # projection matmul with the full (n_heads*v_size)-deep Wo instead of
    # n_heads shallow K=v_size matmuls plus f32 accumulate passes.
    o_cat = jnp.concatenate(heads, axis=-1).astype(compute_dtype)
    x = jnp.einsum('bqf,fh->bqh', o_cat, wo_ref[...],
                   preferred_element_type=jnp.float32)

    # Output bias + residual (f32), then LayerNorm over the last dim.
    x = x + bo_ref[...] + residual
    mean = jnp.mean(x, axis=-1, keepdims=True)
    var = jnp.mean((x - mean) ** 2, axis=-1, keepdims=True)
    y = (x - mean) * jax.lax.rsqrt(var + eps)
    y = y * g_ref[...] + b_ref[...]
    out_ref[...] = y.astype(out_ref.dtype)


def _vmem_capacity_bytes():
    """Generation-aware VMEM capacity (64 MiB on v7x, 128 MiB on v5e/v6e)."""
    try:
        return int(pltpu.get_tpu_info().vmem_capacity_bytes)
    except Exception:
        return 64 * 1024 * 1024            # conservative fallback (v7x size)


def _estimate_vmem_bytes(bt, q_len, seq_len, h_size, n_heads, k_size, v_size,
                         io_bytes, c_bytes):
    rows_q, rows_kv = bt * q_len, bt * seq_len
    f_k, f_v = n_heads * k_size, n_heads * v_size
    # Double-buffered pipelined blocks (q, k, v, out) + resident weights.
    blocks = 2 * (2 * rows_q + 2 * rows_kv) * h_size * io_bytes
    weights = 2 * ((2 * f_k + f_v) * h_size + f_v * h_size) * c_bytes + 6 * h_size * 4
    # In-kernel transients: projections, per-head score/prob tensors, tail.
    proj = (rows_q * f_k + rows_kv * (f_k + f_v)) * c_bytes
    scores = 3 * bt * q_len * seq_len * 4
    tail = 2 * rows_q * f_v * 4 + 4 * rows_q * h_size * 4
    return blocks + weights + proj + scores + tail


def _pick_batch_tile(B, q_len, seq_len, h_size, n_heads, k_size, v_size,
                     io_bytes, c_bytes, budget_bytes):
    """Largest divisor of B that fits the VMEM budget, preferring a grid of
    >= 2 steps so both TensorCores get work on megacore parts (v7x)."""
    divisors = [d for d in range(1, B + 1) if B % d == 0]
    fitting = [d for d in divisors
               if _estimate_vmem_bytes(d, q_len, seq_len, h_size, n_heads,
                                       k_size, v_size, io_bytes, c_bytes)
               <= budget_bytes]
    pool = fitting if fitting else [1]       # smallest-footprint fallback
    multi = [d for d in pool if B // d >= 2]
    return max(multi) if multi else max(pool)


def multi_head_attention(q, k, v, wq, wk, wv, wo, bo, gamma, beta, *,
                         n_heads, k_size, batch_tile=None,
                         use_bf16=True, approx_recip=True):
    B, q_len, h_size = q.shape
    seq_len = k.shape[1]
    v_size = wv.shape[2]
    scaling = 1.0 / np.sqrt(k_size)

    cdt = jnp.bfloat16 if use_bf16 else jnp.float32    # MXU operand dtype
    io_dt = cdt                                        # HBM I/O dtype (bf16 halves traffic)
    io_bytes = jnp.dtype(io_dt).itemsize
    c_bytes = jnp.dtype(cdt).itemsize

    # Fuse heads along the output dim (head-major column blocks), fold the
    # attention scaling into Wq, pre-cast weights to the MXU operand dtype.
    wq_all = (jnp.transpose(wq, (1, 0, 2)) * scaling).reshape(
        h_size, n_heads * k_size).astype(cdt)
    wk_all = jnp.transpose(wk, (1, 0, 2)).reshape(
        h_size, n_heads * k_size).astype(cdt)
    wv_all = jnp.transpose(wv, (1, 0, 2)).reshape(
        h_size, n_heads * v_size).astype(cdt)
    wo_c = wo.astype(cdt)

    vmem_cap = _vmem_capacity_bytes()
    vmem_limit = min(int(vmem_cap * 0.75), 96 * 1024 * 1024)
    budget = vmem_limit // 2                           # headroom for pipeline/scratch

    bt = (_pick_batch_tile(B, q_len, seq_len, h_size, n_heads, k_size, v_size,
                           io_bytes, c_bytes, budget)
          if batch_tile is None else batch_tile)
    assert B % bt == 0, "batch_tile must divide batch"
    grid = (B // bt,)

    q_io, k_io, v_io = (t.astype(io_dt) for t in (q, k, v))

    kernel = functools.partial(
        mha_kernel, n_heads=n_heads, k_size=k_size, v_size=v_size, eps=1e-5,
        compute_dtype=cdt, approx_recip=approx_recip)

    grid_spec = pltpu.PrefetchScalarGridSpec(
        num_scalar_prefetch=0,
        grid=grid,
        in_specs=[
            pl.BlockSpec((bt, q_len, h_size), lambda b: (b, 0, 0)),
            pl.BlockSpec((bt, seq_len, h_size), lambda b: (b, 0, 0)),
            pl.BlockSpec((bt, seq_len, h_size), lambda b: (b, 0, 0)),
            pl.BlockSpec((h_size, n_heads * k_size), lambda b: (0, 0)),
            pl.BlockSpec((h_size, n_heads * k_size), lambda b: (0, 0)),
            pl.BlockSpec((h_size, n_heads * v_size), lambda b: (0, 0)),
            pl.BlockSpec((n_heads * v_size, h_size), lambda b: (0, 0)),
            pl.BlockSpec((1, h_size), lambda b: (0, 0)),
            pl.BlockSpec((1, h_size), lambda b: (0, 0)),
            pl.BlockSpec((1, h_size), lambda b: (0, 0)),
        ],
        out_specs=pl.BlockSpec((bt, q_len, h_size), lambda b: (b, 0, 0)),
    )

    # Advisory cost estimate so XLA can schedule neighbors around the call.
    flops = 2 * B * (
        q_len * h_size * n_heads * k_size
        + seq_len * h_size * n_heads * (k_size + v_size)
        + n_heads * q_len * seq_len * (k_size + v_size)
        + q_len * n_heads * v_size * h_size)
    transcendentals = B * n_heads * q_len * (seq_len + 1) + B * q_len
    bytes_accessed = (
        (2 * B * q_len + 2 * B * seq_len) * h_size * io_bytes
        + (wq_all.size + wk_all.size + wv_all.size + wo_c.size) * c_bytes
        + 3 * h_size * 4)

    out = pl.pallas_call(
        kernel,
        out_shape=jax.ShapeDtypeStruct((B, q_len, h_size), io_dt),
        grid_spec=grid_spec,
        compiler_params=pltpu.CompilerParams(
            dimension_semantics=("parallel",),
            vmem_limit_bytes=vmem_limit),
        cost_estimate=pl.CostEstimate(flops=flops,
                                      transcendentals=transcendentals,
                                      bytes_accessed=bytes_accessed),
    )(q_io, k_io, v_io, wq_all, wk_all, wv_all, wo_c, bo, gamma, beta)

    return out


def reference(q, k, v, wq, wk, wv, wo, bo, gamma, beta, *, k_size):
    B, Lq, H = q.shape
    scaling = 1.0 / np.sqrt(k_size)
    qh = jnp.einsum('blh,nhk->nblk', q, wq)
    kh = jnp.einsum('blh,nhk->nblk', k, wk)
    vh = jnp.einsum('blh,nhv->nblv', v, wv)
    att = jnp.einsum('nbqk,nbsk->nbqs', qh, kh) * scaling
    att = jax.nn.softmax(att, axis=-1)
    o = jnp.einsum('nbqs,nbsv->nbqv', att, vh)        # (nH, B, Lq, Vs)
    o = jnp.transpose(o, (1, 2, 0, 3)).reshape(B, Lq, -1)
    out = o @ wo + bo[0]
    x = out + q
    mean = x.mean(-1, keepdims=True)
    var = ((x - mean) ** 2).mean(-1, keepdims=True)
    return gamma[0] * (x - mean) / jnp.sqrt(var + 1e-5) + beta[0]


if __name__ == "__main__":
    # Small deterministic config
    n_heads, h_size, k_size, v_size = 4, 32, 16, 16
    B, q_len, seq_len = 2, 8, 8

    key = jax.random.PRNGKey(0)
    ks = jax.random.split(key, 8)

    # xavier_normal-style std for (n_heads, h_size, size) params.
    def xavier_std(size):
        fan_in = h_size * size
        fan_out = n_heads * size
        return np.sqrt(2.0 / (fan_in + fan_out))

    wq = jax.random.normal(ks[0], (n_heads, h_size, k_size), jnp.float32) * xavier_std(k_size)
    wk = jax.random.normal(ks[1], (n_heads, h_size, k_size), jnp.float32) * xavier_std(k_size)
    wv = jax.random.normal(ks[2], (n_heads, h_size, v_size), jnp.float32) * xavier_std(v_size)
    # nn.Linear(n_heads*v_size, h_size): store transposed weight (in, out)
    wo = jax.random.normal(ks[3], (n_heads * v_size, h_size), jnp.float32) * (1.0 / np.sqrt(n_heads * v_size))
    bo = jax.random.normal(ks[4], (1, h_size), jnp.float32) * 0.01
    gamma = jnp.ones((1, h_size), jnp.float32)
    beta = jnp.zeros((1, h_size), jnp.float32)

    q = jax.random.normal(ks[5], (B, q_len, h_size), jnp.float32)
    k = jax.random.normal(ks[6], (B, seq_len, h_size), jnp.float32)
    v = jax.random.normal(ks[7], (B, seq_len, h_size), jnp.float32)

    ref = reference(q, k, v, wq, wk, wv, wo, bo, gamma, beta, k_size=k_size)

    # Strict f32 configuration (f32 I/O & MXU operands, exact reciprocal).
    out_f32 = multi_head_attention(q, k, v, wq, wk, wv, wo, bo, gamma, beta,
                                   n_heads=n_heads, k_size=k_size,
                                   use_bf16=False, approx_recip=False)
    out_f32 = jax.block_until_ready(out_f32)
    np.testing.assert_allclose(np.asarray(out_f32), np.asarray(ref),
                               atol=1e-4, rtol=1e-4)

    # Default fast configuration: bf16 HBM I/O + bf16 MXU operands with f32
    # accumulation, approx (EUP) reciprocal — looser tolerance accordingly.
    out_fast = multi_head_attention(q, k, v, wq, wk, wv, wo, bo, gamma, beta,
                                    n_heads=n_heads, k_size=k_size)
    out_fast = jax.block_until_ready(out_fast)
    np.testing.assert_allclose(np.asarray(out_fast.astype(jnp.float32)),
                               np.asarray(ref), atol=2e-2, rtol=2e-2)

    print("KERNEL_OK")
</pallas_src>

<mosaic_0001>
module attributes {stable_mosaic.version = 11 : i64} {
  func.func @mha_kernel(%arg0: i32, %arg1: memref<1x8x32xf32, #tpu.memory_space<vmem>>, %arg2: memref<1x8x32xf32, #tpu.memory_space<vmem>>, %arg3: memref<1x8x32xf32, #tpu.memory_space<vmem>>, %arg4: memref<32x64xf32, #tpu.memory_space<vmem>>, %arg5: memref<32x64xf32, #tpu.memory_space<vmem>>, %arg6: memref<32x64xf32, #tpu.memory_space<vmem>>, %arg7: memref<64x32xf32, #tpu.memory_space<vmem>>, %arg8: memref<1x32xf32, #tpu.memory_space<vmem>>, %arg9: memref<1x32xf32, #tpu.memory_space<vmem>>, %arg10: memref<1x32xf32, #tpu.memory_space<vmem>>, %arg11: memref<1x8x32xf32, #tpu.memory_space<vmem>>) attributes {dimension_semantics = [#tpu.dimension_semantics<parallel>], iteration_bounds = array<i64: 2>, scalar_prefetch = 0 : i64, scratch_operands = 0 : i64, tpu.core_type = #tpu.core_type<tc>, window_params = [{transform_indices = @transform_0, window_bounds = array<i64: 1, 8, 32>}, {transform_indices = @transform_1, window_bounds = array<i64: 1, 8, 32>}, {transform_indices = @transform_2, window_bounds = array<i64: 1, 8, 32>}, {pipeline_mode = #tpu.pipeline_mode<synchronous>, transform_indices = @transform_3, window_bounds = array<i64: 32, 64>}, {pipeline_mode = #tpu.pipeline_mode<synchronous>, transform_indices = @transform_4, window_bounds = array<i64: 32, 64>}, {pipeline_mode = #tpu.pipeline_mode<synchronous>, transform_indices = @transform_5, window_bounds = array<i64: 32, 64>}, {pipeline_mode = #tpu.pipeline_mode<synchronous>, transform_indices = @transform_6, window_bounds = array<i64: 64, 32>}, {pipeline_mode = #tpu.pipeline_mode<synchronous>, transform_indices = @transform_7, window_bounds = array<i64: 1, 32>}, {pipeline_mode = #tpu.pipeline_mode<synchronous>, transform_indices = @transform_8, window_bounds = array<i64: 1, 32>}, {pipeline_mode = #tpu.pipeline_mode<synchronous>, transform_indices = @transform_9, window_bounds = array<i64: 1, 32>}, {transform_indices = @transform_10, window_bounds = array<i64: 1, 8, 32>}]} {
    %c0 = arith.constant 0 : index
    %c0_0 = arith.constant 0 : index
    %c0_1 = arith.constant 0 : index
    %0 = vector.load %arg1[%c0, %c0_0, %c0_1] : memref<1x8x32xf32, #tpu.memory_space<vmem>>, vector<1x8x32xf32>
    %c0_2 = arith.constant 0 : index
    %c0_3 = arith.constant 0 : index
    %1 = vector.load %arg4[%c0_2, %c0_3] : memref<32x64xf32, #tpu.memory_space<vmem>>, vector<32x64xf32>
    "tpu.trace_start"() <{level = 10 : i32, message = "bqh,hf->bqf"}> : () -> ()
    %cst = arith.constant dense<0.000000e+00> : vector<1x8x64xf32>
    %2 = tpu.matmul %0, %1, %cst {dimension_numbers = #tpu.dot_dimension_numbers<[2], [0], [0, 1], [1], [0, 0, 0, 1, 1, 1], [], []>} : vector<1x8x32xf32>, vector<32x64xf32>, vector<1x8x64xf32> -> vector<1x8x64xf32>
    "tpu.trace_stop"() : () -> ()
    %c0_4 = arith.constant 0 : index
    %c0_5 = arith.constant 0 : index
    %c0_6 = arith.constant 0 : index
    %3 = vector.load %arg2[%c0_4, %c0_5, %c0_6] : memref<1x8x32xf32, #tpu.memory_space<vmem>>, vector<1x8x32xf32>
    %c0_7 = arith.constant 0 : index
    %c0_8 = arith.constant 0 : index
    %4 = vector.load %arg5[%c0_7, %c0_8] : memref<32x64xf32, #tpu.memory_space<vmem>>, vector<32x64xf32>
    "tpu.trace_start"() <{level = 10 : i32, message = "bsh,hf->bsf"}> : () -> ()
    %cst_9 = arith.constant dense<0.000000e+00> : vector<1x8x64xf32>
    %5 = tpu.matmul %3, %4, %cst_9 {dimension_numbers = #tpu.dot_dimension_numbers<[2], [0], [0, 1], [1], [0, 0, 0, 1, 1, 1], [], []>} : vector<1x8x32xf32>, vector<32x64xf32>, vector<1x8x64xf32> -> vector<1x8x64xf32>
    "tpu.trace_stop"() : () -> ()
    %c0_10 = arith.constant 0 : index
    %c0_11 = arith.constant 0 : index
    %c0_12 = arith.constant 0 : index
    %6 = vector.load %arg3[%c0_10, %c0_11, %c0_12] : memref<1x8x32xf32, #tpu.memory_space<vmem>>, vector<1x8x32xf32>
    %c0_13 = arith.constant 0 : index
    %c0_14 = arith.constant 0 : index
    %7 = vector.load %arg6[%c0_13, %c0_14] : memref<32x64xf32, #tpu.memory_space<vmem>>, vector<32x64xf32>
    "tpu.trace_start"() <{level = 10 : i32, message = "bsh,hf->bsf"}> : () -> ()
    %cst_15 = arith.constant dense<0.000000e+00> : vector<1x8x64xf32>
    %8 = tpu.matmul %6, %7, %cst_15 {dimension_numbers = #tpu.dot_dimension_numbers<[2], [0], [0, 1], [1], [0, 0, 0, 1, 1, 1], [], []>} : vector<1x8x32xf32>, vector<32x64xf32>, vector<1x8x64xf32> -> vector<1x8x64xf32>
    "tpu.trace_stop"() : () -> ()
    %9 = vector.extract_strided_slice %2 {offsets = [0, 0, 0], sizes = [1, 8, 16], strides = [1, 1, 1]} : vector<1x8x64xf32> to vector<1x8x16xf32>
    %10 = vector.extract_strided_slice %5 {offsets = [0, 0, 0], sizes = [1, 8, 16], strides = [1, 1, 1]} : vector<1x8x64xf32> to vector<1x8x16xf32>
    %11 = vector.extract_strided_slice %8 {offsets = [0, 0, 0], sizes = [1, 8, 16], strides = [1, 1, 1]} : vector<1x8x64xf32> to vector<1x8x16xf32>
    "tpu.trace_start"() <{level = 10 : i32, message = "bqk,bsk->bqs"}> : () -> ()
    %cst_16 = arith.constant dense<0.000000e+00> : vector<1x8x8xf32>
    %12 = tpu.matmul %9, %10, %cst_16 {dimension_numbers = #tpu.dot_dimension_numbers<[2], [2], [1], [1], [0, 0, 0, 1, 1, 1], [0], [0]>} : vector<1x8x16xf32>, vector<1x8x16xf32>, vector<1x8x8xf32> -> vector<1x8x8xf32>
    "tpu.trace_stop"() : () -> ()
    %cst_17 = arith.constant dense<0xFF800000> : vector<1x8xf32>
    %13 = vector.multi_reduction <maximumf>, %12, %cst_17 [2] : vector<1x8x8xf32> to vector<1x8xf32>
    %14 = vector.shape_cast %13 : vector<1x8xf32> to vector<1x8x1xf32>
    %15 = vector.broadcast %14 : vector<1x8x1xf32> to vector<1x8x8xf32>
    %16 = arith.subf %12, %15 : vector<1x8x8xf32>
    %17 = math.exp %16 : vector<1x8x8xf32>
    %cst_18 = arith.constant dense<0.000000e+00> : vector<1x8xf32>
    %18 = vector.multi_reduction <add>, %17, %cst_18 [2] : vector<1x8x8xf32> to vector<1x8xf32>
    %19 = vector.shape_cast %18 : vector<1x8xf32> to vector<1x8x1xf32>
    %20 = tpu.reciprocal %19 : vector<1x8x1xf32> -> vector<1x8x1xf32>
    %21 = vector.broadcast %20 : vector<1x8x1xf32> to vector<1x8x8xf32>
    %22 = arith.mulf %17, %21 : vector<1x8x8xf32>
    "tpu.trace_start"() <{level = 10 : i32, message = "bqs,bsv->bqv"}> : () -> ()
    %cst_19 = arith.constant dense<0.000000e+00> : vector<1x8x16xf32>
    %23 = tpu.matmul %22, %11, %cst_19 {dimension_numbers = #tpu.dot_dimension_numbers<[2], [1], [1], [2], [0, 0, 0, 1, 1, 2], [0], [0]>} : vector<1x8x8xf32>, vector<1x8x16xf32>, vector<1x8x16xf32> -> vector<1x8x16xf32>
    "tpu.trace_stop"() : () -> ()
    %24 = vector.extract_strided_slice %2 {offsets = [0, 0, 16], sizes = [1, 8, 16], strides = [1, 1, 1]} : vector<1x8x64xf32> to vector<1x8x16xf32>
    %25 = vector.extract_strided_slice %5 {offsets = [0, 0, 16], sizes = [1, 8, 16], strides = [1, 1, 1]} : vector<1x8x64xf32> to vector<1x8x16xf32>
    %26 = vector.extract_strided_slice %8 {offsets = [0, 0, 16], sizes = [1, 8, 16], strides = [1, 1, 1]} : vector<1x8x64xf32> to vector<1x8x16xf32>
    "tpu.trace_start"() <{level = 10 : i32, message = "bqk,bsk->bqs"}> : () -> ()
    %cst_20 = arith.constant dense<0.000000e+00> : vector<1x8x8xf32>
    %27 = tpu.matmul %24, %25, %cst_20 {dimension_numbers = #tpu.dot_dimension_numbers<[2], [2], [1], [1], [0, 0, 0, 1, 1, 1], [0], [0]>} : vector<1x8x16xf32>, vector<1x8x16xf32>, vector<1x8x8xf32> -> vector<1x8x8xf32>
    "tpu.trace_stop"() : () -> ()
    %cst_21 = arith.constant dense<0xFF800000> : vector<1x8xf32>
    %28 = vector.multi_reduction <maximumf>, %27, %cst_21 [2] : vector<1x8x8xf32> to vector<1x8xf32>
    %29 = vector.shape_cast %28 : vector<1x8xf32> to vector<1x8x1xf32>
    %30 = vector.broadcast %29 : vector<1x8x1xf32> to vector<1x8x8xf32>
    %31 = arith.subf %27, %30 : vector<1x8x8xf32>
    %32 = math.exp %31 : vector<1x8x8xf32>
    %cst_22 = arith.constant dense<0.000000e+00> : vector<1x8xf32>
    %33 = vector.multi_reduction <add>, %32, %cst_22 [2] : vector<1x8x8xf32> to vector<1x8xf32>
    %34 = vector.shape_cast %33 : vector<1x8xf32> to vector<1x8x1xf32>
    %35 = tpu.reciprocal %34 : vector<1x8x1xf32> -> vector<1x8x1xf32>
    %36 = vector.broadcast %35 : vector<1x8x1xf32> to vector<1x8x8xf32>
    %37 = arith.mulf %32, %36 : vector<1x8x8xf32>
    "tpu.trace_start"() <{level = 10 : i32, message = "bqs,bsv->bqv"}> : () -> ()
    %cst_23 = arith.constant dense<0.000000e+00> : vector<1x8x16xf32>
    %38 = tpu.matmul %37, %26, %cst_23 {dimension_numbers = #tpu.dot_dimension_numbers<[2], [1], [1], [2], [0, 0, 0, 1, 1, 2], [0], [0]>} : vector<1x8x8xf32>, vector<1x8x16xf32>, vector<1x8x16xf32> -> vector<1x8x16xf32>
    "tpu.trace_stop"() : () -> ()
    %39 = vector.extract_strided_slice %2 {offsets = [0, 0, 32], sizes = [1, 8, 16], strides = [1, 1, 1]} : vector<1x8x64xf32> to vector<1x8x16xf32>
    %40 = vector.extract_strided_slice %5 {offsets = [0, 0, 32], sizes = [1, 8, 16], strides = [1, 1, 1]} : vector<1x8x64xf32> to vector<1x8x16xf32>
    %41 = vector.extract_strided_slice %8 {offsets = [0, 0, 32], sizes = [1, 8, 16], strides = [1, 1, 1]} : vector<1x8x64xf32> to vector<1x8x16xf32>
    "tpu.trace_start"() <{level = 10 : i32, message = "bqk,bsk->bqs"}> : () -> ()
    %cst_24 = arith.constant dense<0.000000e+00> : vector<1x8x8xf32>
    %42 = tpu.matmul %39, %40, %cst_24 {dimension_numbers = #tpu.dot_dimension_numbers<[2], [2], [1], [1], [0, 0, 0, 1, 1, 1], [0], [0]>} : vector<1x8x16xf32>, vector<1x8x16xf32>, vector<1x8x8xf32> -> vector<1x8x8xf32>
    "tpu.trace_stop"() : () -> ()
    %cst_25 = arith.constant dense<0xFF800000> : vector<1x8xf32>
    %43 = vector.multi_reduction <maximumf>, %42, %cst_25 [2] : vector<1x8x8xf32> to vector<1x8xf32>
    %44 = vector.shape_cast %43 : vector<1x8xf32> to vector<1x8x1xf32>
    %45 = vector.broadcast %44 : vector<1x8x1xf32> to vector<1x8x8xf32>
    %46 = arith.subf %42, %45 : vector<1x8x8xf32>
    %47 = math.exp %46 : vector<1x8x8xf32>
    %cst_26 = arith.constant dense<0.000000e+00> : vector<1x8xf32>
    %48 = vector.multi_reduction <add>, %47, %cst_26 [2] : vector<1x8x8xf32> to vector<1x8xf32>
    %49 = vector.shape_cast %48 : vector<1x8xf32> to vector<1x8x1xf32>
    %50 = tpu.reciprocal %49 : vector<1x8x1xf32> -> vector<1x8x1xf32>
    %51 = vector.broadcast %50 : vector<1x8x1xf32> to vector<1x8x8xf32>
    %52 = arith.mulf %47, %51 : vector<1x8x8xf32>
    "tpu.trace_start"() <{level = 10 : i32, message = "bqs,bsv->bqv"}> : () -> ()
    %cst_27 = arith.constant dense<0.000000e+00> : vector<1x8x16xf32>
    %53 = tpu.matmul %52, %41, %cst_27 {dimension_numbers = #tpu.dot_dimension_numbers<[2], [1], [1], [2], [0, 0, 0, 1, 1, 2], [0], [0]>} : vector<1x8x8xf32>, vector<1x8x16xf32>, vector<1x8x16xf32> -> vector<1x8x16xf32>
    "tpu.trace_stop"() : () -> ()
    %54 = vector.extract_strided_slice %2 {offsets = [0, 0, 48], sizes = [1, 8, 16], strides = [1, 1, 1]} : vector<1x8x64xf32> to vector<1x8x16xf32>
    %55 = vector.extract_strided_slice %5 {offsets = [0, 0, 48], sizes = [1, 8, 16], strides = [1, 1, 1]} : vector<1x8x64xf32> to vector<1x8x16xf32>
    %56 = vector.extract_strided_slice %8 {offsets = [0, 0, 48], sizes = [1, 8, 16], strides = [1, 1, 1]} : vector<1x8x64xf32> to vector<1x8x16xf32>
    "tpu.trace_start"() <{level = 10 : i32, message = "bqk,bsk->bqs"}> : () -> ()
    %cst_28 = arith.constant dense<0.000000e+00> : vector<1x8x8xf32>
    %57 = tpu.matmul %54, %55, %cst_28 {dimension_numbers = #tpu.dot_dimension_numbers<[2], [2], [1], [1], [0, 0, 0, 1, 1, 1], [0], [0]>} : vector<1x8x16xf32>, vector<1x8x16xf32>, vector<1x8x8xf32> -> vector<1x8x8xf32>
    "tpu.trace_stop"() : () -> ()
    %cst_29 = arith.constant dense<0xFF800000> : vector<1x8xf32>
    %58 = vector.multi_reduction <maximumf>, %57, %cst_29 [2] : vector<1x8x8xf32> to vector<1x8xf32>
    %59 = vector.shape_cast %58 : vector<1x8xf32> to vector<1x8x1xf32>
    %60 = vector.broadcast %59 : vector<1x8x1xf32> to vector<1x8x8xf32>
    %61 = arith.subf %57, %60 : vector<1x8x8xf32>
    %62 = math.exp %61 : vector<1x8x8xf32>
    %cst_30 = arith.constant dense<0.000000e+00> : vector<1x8xf32>
    %63 = vector.multi_reduction <add>, %62, %cst_30 [2] : vector<1x8x8xf32> to vector<1x8xf32>
    %64 = vector.shape_cast %63 : vector<1x8xf32> to vector<1x8x1xf32>
    %65 = tpu.reciprocal %64 : vector<1x8x1xf32> -> vector<1x8x1xf32>
    %66 = vector.broadcast %65 : vector<1x8x1xf32> to vector<1x8x8xf32>
    %67 = arith.mulf %62, %66 : vector<1x8x8xf32>
    "tpu.trace_start"() <{level = 10 : i32, message = "bqs,bsv->bqv"}> : () -> ()
    %cst_31 = arith.constant dense<0.000000e+00> : vector<1x8x16xf32>
    %68 = tpu.matmul %67, %56, %cst_31 {dimension_numbers = #tpu.dot_dimension_numbers<[2], [1], [1], [2], [0, 0, 0, 1, 1, 2], [0], [0]>} : vector<1x8x8xf32>, vector<1x8x16xf32>, vector<1x8x16xf32> -> vector<1x8x16xf32>
    "tpu.trace_stop"() : () -> ()
    %69 = tpu.concatenate %23, %38, %53, %68 in 2 : vector<1x8x16xf32>, vector<1x8x16xf32>, vector<1x8x16xf32>, vector<1x8x16xf32> -> vector<1x8x64xf32>
    %c0_32 = arith.constant 0 : index
    %c0_33 = arith.constant 0 : index
    %70 = vector.load %arg7[%c0_32, %c0_33] : memref<64x32xf32, #tpu.memory_space<vmem>>, vector<64x32xf32>
    "tpu.trace_start"() <{level = 10 : i32, message = "bqf,fh->bqh"}> : () -> ()
    %cst_34 = arith.constant dense<0.000000e+00> : vector<1x8x32xf32>
    %71 = tpu.matmul %69, %70, %cst_34 {dimension_numbers = #tpu.dot_dimension_numbers<[2], [0], [0, 1], [1], [0, 0, 0, 1, 1, 1], [], []>} : vector<1x8x64xf32>, vector<64x32xf32>, vector<1x8x32xf32> -> vector<1x8x32xf32>
    "tpu.trace_stop"() : () -> ()
    %c0_35 = arith.constant 0 : index
    %c0_36 = arith.constant 0 : index
    %72 = vector.load %arg8[%c0_35, %c0_36] : memref<1x32xf32, #tpu.memory_space<vmem>>, vector<1x32xf32>
    %73 = vector.shape_cast %72 : vector<1x32xf32> to vector<1x1x32xf32>
    %74 = vector.broadcast %73 : vector<1x1x32xf32> to vector<1x8x32xf32>
    %75 = arith.addf %71, %74 : vector<1x8x32xf32>
    %76 = arith.addf %75, %0 : vector<1x8x32xf32>
    %cst_37 = arith.constant dense<0.000000e+00> : vector<1x8xf32>
    %77 = vector.multi_reduction <add>, %76, %cst_37 [2] : vector<1x8x32xf32> to vector<1x8xf32>
    %78 = vector.shape_cast %77 : vector<1x8xf32> to vector<1x8x1xf32>
    %cst_38 = arith.constant 3.200000e+01 : f32
    %79 = vector.broadcast %cst_38 : f32 to vector<1x8x1xf32>
    %80 = arith.divf %78, %79 : vector<1x8x1xf32>
    %81 = vector.broadcast %80 : vector<1x8x1xf32> to vector<1x8x32xf32>
    %82 = arith.subf %76, %81 : vector<1x8x32xf32>
    %83 = arith.mulf %82, %82 : vector<1x8x32xf32>
    %cst_39 = arith.constant dense<0.000000e+00> : vector<1x8xf32>
    %84 = vector.multi_reduction <add>, %83, %cst_39 [2] : vector<1x8x32xf32> to vector<1x8xf32>
    %85 = vector.shape_cast %84 : vector<1x8xf32> to vector<1x8x1xf32>
    %cst_40 = arith.constant 3.200000e+01 : f32
    %86 = vector.broadcast %cst_40 : f32 to vector<1x8x1xf32>
    %87 = arith.divf %85, %86 : vector<1x8x1xf32>
    %88 = vector.broadcast %80 : vector<1x8x1xf32> to vector<1x8x32xf32>
    %89 = arith.subf %76, %88 : vector<1x8x32xf32>
    %cst_41 = arith.constant 9.99999974E-6 : f32
    %90 = vector.broadcast %cst_41 : f32 to vector<1x8x1xf32>
    %91 = arith.addf %87, %90 : vector<1x8x1xf32>
    %92 = math.rsqrt %91 : vector<1x8x1xf32>
    %93 = vector.broadcast %92 : vector<1x8x1xf32> to vector<1x8x32xf32>
    %94 = arith.mulf %89, %93 : vector<1x8x32xf32>
    %c0_42 = arith.constant 0 : index
    %c0_43 = arith.constant 0 : index
    %95 = vector.load %arg9[%c0_42, %c0_43] : memref<1x32xf32, #tpu.memory_space<vmem>>, vector<1x32xf32>
    %96 = vector.shape_cast %95 : vector<1x32xf32> to vector<1x1x32xf32>
    %97 = vector.broadcast %96 : vector<1x1x32xf32> to vector<1x8x32xf32>
    %98 = arith.mulf %94, %97 : vector<1x8x32xf32>
    %c0_44 = arith.constant 0 : index
    %c0_45 = arith.constant 0 : index
    %99 = vector.load %arg10[%c0_44, %c0_45] : memref<1x32xf32, #tpu.memory_space<vmem>>, vector<1x32xf32>
    %100 = vector.shape_cast %99 : vector<1x32xf32> to vector<1x1x32xf32>
    %101 = vector.broadcast %100 : vector<1x1x32xf32> to vector<1x8x32xf32>
    %102 = arith.addf %98, %101 : vector<1x8x32xf32>
    %c0_46 = arith.constant 0 : index
    %c0_47 = arith.constant 0 : index
    %c0_48 = arith.constant 0 : index
    %103 = vector.load %arg11[%c0_46, %c0_47, %c0_48] : memref<1x8x32xf32, #tpu.memory_space<vmem>>, vector<1x8x32xf32>
    tpu.vector_store %arg11[%c0_46, %c0_47, %c0_48], %102 {strides = array<i32>} : memref<1x8x32xf32, #tpu.memory_space<vmem>>, vector<1x8x32xf32>,
    return
  }
  func.func @transform_0(%arg0: i32) -> (i32, i32, i32) {
    %c0_i32 = arith.constant 0 : i32
    %c0_i32_0 = arith.constant 0 : i32
    %c0_i32_1 = arith.constant 0 : i32
    return %arg0, %c0_i32, %c0_i32_0 : i32, i32, i32
  }
  func.func @transform_1(%arg0: i32) -> (i32, i32, i32) {
    %c0_i32 = arith.constant 0 : i32
    %c0_i32_0 = arith.constant 0 : i32
    %c0_i32_1 = arith.constant 0 : i32
    return %arg0, %c0_i32, %c0_i32_0 : i32, i32, i32
  }
  func.func @transform_2(%arg0: i32) -> (i32, i32, i32) {
    %c0_i32 = arith.constant 0 : i32
    %c0_i32_0 = arith.constant 0 : i32
    %c0_i32_1 = arith.constant 0 : i32
    return %arg0, %c0_i32, %c0_i32_0 : i32, i32, i32
  }
  func.func @transform_3(%arg0: i32) -> (i32, i32) {
    %c0_i32 = arith.constant 0 : i32
    %c0_i32_0 = arith.constant 0 : i32
    %c0_i32_1 = arith.constant 0 : i32
    return %c0_i32, %c0_i32_0 : i32, i32
  }
  func.func @transform_4(%arg0: i32) -> (i32, i32) {
    %c0_i32 = arith.constant 0 : i32
    %c0_i32_0 = arith.constant 0 : i32
    %c0_i32_1 = arith.constant 0 : i32
    return %c0_i32, %c0_i32_0 : i32, i32
  }
  func.func @transform_5(%arg0: i32) -> (i32, i32) {
    %c0_i32 = arith.constant 0 : i32
    %c0_i32_0 = arith.constant 0 : i32
    %c0_i32_1 = arith.constant 0 : i32
    return %c0_i32, %c0_i32_0 : i32, i32
  }
  func.func @transform_6(%arg0: i32) -> (i32, i32) {
    %c0_i32 = arith.constant 0 : i32
    %c0_i32_0 = arith.constant 0 : i32
    %c0_i32_1 = arith.constant 0 : i32
    return %c0_i32, %c0_i32_0 : i32, i32
  }
  func.func @transform_7(%arg0: i32) -> (i32, i32) {
    %c0_i32 = arith.constant 0 : i32
    %c0_i32_0 = arith.constant 0 : i32
    %c0_i32_1 = arith.constant 0 : i32
    return %c0_i32, %c0_i32_0 : i32, i32
  }
  func.func @transform_8(%arg0: i32) -> (i32, i32) {
    %c0_i32 = arith.constant 0 : i32
    %c0_i32_0 = arith.constant 0 : i32
    %c0_i32_1 = arith.constant 0 : i32
    return %c0_i32, %c0_i32_0 : i32, i32
  }
  func.func @transform_9(%arg0: i32) -> (i32, i32) {
    %c0_i32 = arith.constant 0 : i32
    %c0_i32_0 = arith.constant 0 : i32
    %c0_i32_1 = arith.constant 0 : i32
    return %c0_i32, %c0_i32_0 : i32, i32
  }
  func.func @transform_10(%arg0: i32) -> (i32, i32, i32) {
    %c0_i32 = arith.constant 0 : i32
    %c0_i32_0 = arith.constant 0 : i32
    %c0_i32_1 = arith.constant 0 : i32
    return %arg0, %c0_i32, %c0_i32_0 : i32, i32, i32
  }
}

</mosaic_0001>

<llo_original>
// kernel: tpu_custom_call.1
$region0: #{tpu_custom_call.1}
  #allocation0 [shape = 'u32[]', space=smem, size = 0x4, offset = 0x4, fixed_abs, tag = 'smem constant byte address 0x4 - core index']
  #allocation1 [shape = 'u32[144,128]{1,0:T(1,128)}', space=vmem, size = 0x12000, scoped, tag = 'internal scratch']
  %s0 = inlined_call_operand.hbm [shape: f32[2,8,32], index: 0, kind: input, shape index: {}]
  %s1 = inlined_call_operand.hbm [shape: f32[2,8,32], index: 1, kind: input, shape index: {}]
  %s2 = inlined_call_operand.hbm [shape: f32[2,8,32], index: 2, kind: input, shape index: {}]
  %s3 = inlined_call_operand.vmem [shape: f32[32,64], index: 3, kind: input, shape index: {}]
  %s4 = inlined_call_operand.vmem [shape: f32[32,64], index: 4, kind: input, shape index: {}]
  %s5 = inlined_call_operand.vmem [shape: f32[32,64], index: 5, kind: input, shape index: {}]
  %s6 = inlined_call_operand.vmem [shape: f32[64,32], index: 6, kind: input, shape index: {}]
  %s7 = inlined_call_operand.vmem [shape: f32[1,32], index: 7, kind: input, shape index: {}]
  %s8 = inlined_call_operand.vmem [shape: f32[1,32], index: 8, kind: input, shape index: {}]
  %s9 = inlined_call_operand.vmem [shape: f32[1,32], index: 9, kind: input, shape index: {}]
  %s10 = inlined_call_operand.hbm [shape: f32[2,8,32], index: 10, kind: output, shape index: {}]
  %s11 = sld [smem:[#allocation0]]
  $region85: #{tpu_custom_call.1} parent=0
    _
  %s13 = ssub.s32 1, %s11
  %s14 = scalar_select 0, %s13, %s11
  $region1: #{tpu_custom_call.1} parent=0
    #allocation2 [shape = 'u8[8192]{0}', space=vmem, size = 0x2000, scoped, tag = 'input window, operand 0']
    #allocation3 [shape = 's32[2]{0}', space=sflag, size = 0x8, scoped, tag = 'scoped memory for tpu_custom_call.1']
    #allocation4 [shape = 's32[2]{0}', space=sflag, size = 0x8, scoped, tag = 'scoped memory for tpu_custom_call.1']
    #allocation5 [shape = 'u8[8192]{0}', space=vmem, size = 0x2000, scoped, tag = 'input window, operand 1']
    #allocation6 [shape = 's32[2]{0}', space=sflag, size = 0x8, scoped, tag = 'scoped memory for tpu_custom_call.1']
    #allocation7 [shape = 'u8[8192]{0}', space=vmem, size = 0x2000, scoped, tag = 'input window, operand 2']
    #allocation8 [shape = 'u8[8192]{0}', space=vmem, size = 0x2000, scoped, tag = 'output window, operand 0']
    %15 = vsyncpa [#allocation3], 0
    %s16 = scalar_lea.sflag [#allocation3], 1
    %17 = vsyncpa %s16, 0
    %18 = vsyncpa [#allocation6], 0
    %s19 = scalar_lea.sflag [#allocation6], 1
    %20 = vsyncpa %s19, 0
    %21 = vsyncpa [#allocation4], 0
    %s22 = scalar_lea.sflag [#allocation4], 1
    %23 = vsyncpa %s22, 0
    loop: start=0, step=1, limit=4
    $region2: #{tpu_custom_call.1} parent=1 // loop_pre_header
      _
    $region3: #{tpu_custom_call.1} parent=1 // loop_header
      %s25 = sphi 0, %s29
      %p26 = scmp.ge.s32.totalorder %s25, 4
      %s35 = sphi 0, %s37
      %s38 = sphi 0, %s35
      %s39 = sphi 0, %s38
      %s55 = sphi 0, %s39
      %s61 = sphi 0, %s63
      %s64 = sphi 0, %s61
      %s65 = sphi 0, %s64
      %s81 = sphi 0, %s65
      %s87 = sphi 0, %s89
      %s90 = sphi 0, %s87
      %s91 = sphi 0, %s90
      %s107 = sphi 0, %s91
      %s111 = sphi 0, %s111
      %s113 = sphi 0, %s111
      %s114 = sphi 0, %s113
      %s128 = sphi 0, %s114
      %s132 = sphi 0, %s132
      %s134 = sphi 0, %s132
      %s135 = sphi 0, %s134
      %s149 = sphi 0, %s135
      %s153 = sphi 0, %s153
      %s155 = sphi 0, %s153
      %s156 = sphi 0, %s155
      %s170 = sphi 0, %s156
      %s174 = sphi 0, %s174
      %s176 = sphi 0, %s174
      %s177 = sphi 0, %s176
      %s191 = sphi 0, %s177
      %s195 = sphi 0, %s195
      %s197 = sphi 0, %s195
      %s198 = sphi 0, %s197
      %s212 = sphi 0, %s198
      %s216 = sphi 0, %s216
      %s218 = sphi 0, %s216
      %s219 = sphi 0, %s218
      %s233 = sphi 0, %s219
      %s237 = sphi 0, %s237
      %s239 = sphi 0, %s237
      %s240 = sphi 0, %s239
      %s254 = sphi 0, %s240
      %s260 = sphi 0, %s262
      %s263 = sphi 0, %s260
      %s264 = sphi 0, %s263
      %s280 = sphi 0, %s264
    $region4: #{tpu_custom_call.1} parent=1 // loop_header_branch
      %28 = sbr.rel (%p26) target = $region8
    $region5: #{tpu_custom_call.1} parent=1 // loop_body
      %s30 = ssub.s32 %s25, 1
      %s31 = ssub.s32 %s25, 2
      %s32 = sadd.s32 %s25, 1
      %s33 = ssub.s32 %s25, %s32
      %p34 = scmp.eq.s32.totalorder %s33, 0
      %s36 = sadd.s32 %s35, 1
      %s37 = scalar_select %p34, %s35, %s36
      %p40 = pneg %p34
      %p41 = scmp.eq.s32.totalorder %s25, 1
      %p42 = por %p40, %p41
      %p43 = scmp.ne.s32.totalorder %s35, %s38
      %p44 = scmp.eq.s32.totalorder %s25, 0
      %p45 = por %p43, %p44
      %p46 = scmp.ne.s32.totalorder %s35, %s38
      %p47 = scmp.eq.s32.totalorder %s30, 1
      %p48 = por %p46, %p47
      %p49 = scmp.ne.s32.totalorder %s38, %s39
      %p50 = scmp.eq.s32.totalorder %s30, 0
      %p51 = por %p49, %p50
      %p52 = scmp.ne.s32.totalorder %s38, %s39
      %p53 = scmp.eq.s32.totalorder %s31, 1
      %p54 = por %p52, %p53
      %p56 = scmp.ne.s32.totalorder %s39, %s55
      %p57 = scmp.eq.s32.totalorder %s31, 0
      %p58 = por %p56, %p57
      %s59 = ssub.s32 %s25, %s32
      %p60 = scmp.eq.s32.totalorder %s59, 0
      %s62 = sadd.s32 %s61, 1
      %s63 = scalar_select %p60, %s61, %s62
      %p66 = pneg %p60
      %p67 = scmp.eq.s32.totalorder %s25, 1
      %p68 = por %p66, %p67
      %p69 = scmp.ne.s32.totalorder %s61, %s64
      %p70 = scmp.eq.s32.totalorder %s25, 0
      %p71 = por %p69, %p70
      %p72 = scmp.ne.s32.totalorder %s61, %s64
      %p73 = scmp.eq.s32.totalorder %s30, 1
      %p74 = por %p72, %p73
      %p75 = scmp.ne.s32.totalorder %s64, %s65
      %p76 = scmp.eq.s32.totalorder %s30, 0
      %p77 = por %p75, %p76
      %p78 = scmp.ne.s32.totalorder %s64, %s65
      %p79 = scmp.eq.s32.totalorder %s31, 1
      %p80 = por %p78, %p79
      %p82 = scmp.ne.s32.totalorder %s65, %s81
      %p83 = scmp.eq.s32.totalorder %s31, 0
      %p84 = por %p82, %p83
      %s85 = ssub.s32 %s25, %s32
      %p86 = scmp.eq.s32.totalorder %s85, 0
      %s88 = sadd.s32 %s87, 1
      %s89 = scalar_select %p86, %s87, %s88
      %p92 = pneg %p86
      %p93 = scmp.eq.s32.totalorder %s25, 1
      %p94 = por %p92, %p93
      %p95 = scmp.ne.s32.totalorder %s87, %s90
      %p96 = scmp.eq.s32.totalorder %s25, 0
      %p97 = por %p95, %p96
      %p98 = scmp.ne.s32.totalorder %s87, %s90
      %p99 = scmp.eq.s32.totalorder %s30, 1
      %p100 = por %p98, %p99
      %p101 = scmp.ne.s32.totalorder %s90, %s91
      %p102 = scmp.eq.s32.totalorder %s30, 0
      %p103 = por %p101, %p102
      %p104 = scmp.ne.s32.totalorder %s90, %s91
      %p105 = scmp.eq.s32.totalorder %s31, 1
      %p106 = por %p104, %p105
      %p108 = scmp.ne.s32.totalorder %s91, %s107
      %p109 = scmp.eq.s32.totalorder %s31, 0
      %p110 = por %p108, %p109
      %s112 = sadd.s32 %s111, 1
      %p115 = scmp.eq.s32.totalorder %s25, 1
      %p116 = scmp.ne.s32.totalorder %s111, %s113
      %p117 = scmp.eq.s32.totalorder %s25, 0
      %p118 = por %p116, %p117
      %p119 = scmp.ne.s32.totalorder %s111, %s113
      %p120 = scmp.eq.s32.totalorder %s30, 1
      %p121 = por %p119, %p120
      %p122 = scmp.ne.s32.totalorder %s113, %s114
      %p123 = scmp.eq.s32.totalorder %s30, 0
      %p124 = por %p122, %p123
      %p125 = scmp.ne.s32.totalorder %s113, %s114
      %p126 = scmp.eq.s32.totalorder %s31, 1
      %p127 = por %p125, %p126
      %p129 = scmp.ne.s32.totalorder %s114, %s128
      %p130 = scmp.eq.s32.totalorder %s31, 0
      %p131 = por %p129, %p130
      %s133 = sadd.s32 %s132, 1
      %p136 = scmp.eq.s32.totalorder %s25, 1
      %p137 = scmp.ne.s32.totalorder %s132, %s134
      %p138 = scmp.eq.s32.totalorder %s25, 0
      %p139 = por %p137, %p138
      %p140 = scmp.ne.s32.totalorder %s132, %s134
      %p141 = scmp.eq.s32.totalorder %s30, 1
      %p142 = por %p140, %p141
      %p143 = scmp.ne.s32.totalorder %s134, %s135
      %p144 = scmp.eq.s32.totalorder %s30, 0
      %p145 = por %p143, %p144
      %p146 = scmp.ne.s32.totalorder %s134, %s135
      %p147 = scmp.eq.s32.totalorder %s31, 1
      %p148 = por %p146, %p147
      %p150 = scmp.ne.s32.totalorder %s135, %s149
      %p151 = scmp.eq.s32.totalorder %s31, 0
      %p152 = por %p150, %p151
      %s154 = sadd.s32 %s153, 1
      %p157 = scmp.eq.s32.totalorder %s25, 1
      %p158 = scmp.ne.s32.totalorder %s153, %s155
      %p159 = scmp.eq.s32.totalorder %s25, 0
      %p160 = por %p158, %p159
      %p161 = scmp.ne.s32.totalorder %s153, %s155
      %p162 = scmp.eq.s32.totalorder %s30, 1
      %p163 = por %p161, %p162
      %p164 = scmp.ne.s32.totalorder %s155, %s156
      %p165 = scmp.eq.s32.totalorder %s30, 0
      %p166 = por %p164, %p165
      %p167 = scmp.ne.s32.totalorder %s155, %s156
      %p168 = scmp.eq.s32.totalorder %s31, 1
      %p169 = por %p167, %p168
      %p171 = scmp.ne.s32.totalorder %s156, %s170
      %p172 = scmp.eq.s32.totalorder %s31, 0
      %p173 = por %p171, %p172
      %s175 = sadd.s32 %s174, 1
      %p178 = scmp.eq.s32.totalorder %s25, 1
      %p179 = scmp.ne.s32.totalorder %s174, %s176
      %p180 = scmp.eq.s32.totalorder %s25, 0
      %p181 = por %p179, %p180
      %p182 = scmp.ne.s32.totalorder %s174, %s176
      %p183 = scmp.eq.s32.totalorder %s30, 1
      %p184 = por %p182, %p183
      %p185 = scmp.ne.s32.totalorder %s176, %s177
      %p186 = scmp.eq.s32.totalorder %s30, 0
      %p187 = por %p185, %p186
      %p188 = scmp.ne.s32.totalorder %s176, %s177
      %p189 = scmp.eq.s32.totalorder %s31, 1
      %p190 = por %p188, %p189
      %p192 = scmp.ne.s32.totalorder %s177, %s191
      %p193 = scmp.eq.s32.totalorder %s31, 0
      %p194 = por %p192, %p193
      %s196 = sadd.s32 %s195, 1
      %p199 = scmp.eq.s32.totalorder %s25, 1
      %p200 = scmp.ne.s32.totalorder %s195, %s197
      %p201 = scmp.eq.s32.totalorder %s25, 0
      %p202 = por %p200, %p201
      %p203 = scmp.ne.s32.totalorder %s195, %s197
      %p204 = scmp.eq.s32.totalorder %s30, 1
      %p205 = por %p203, %p204
      %p206 = scmp.ne.s32.totalorder %s197, %s198
      %p207 = scmp.eq.s32.totalorder %s30, 0
      %p208 = por %p206, %p207
      %p209 = scmp.ne.s32.totalorder %s197, %s198
      %p210 = scmp.eq.s32.totalorder %s31, 1
      %p211 = por %p209, %p210
      %p213 = scmp.ne.s32.totalorder %s198, %s212
      %p214 = scmp.eq.s32.totalorder %s31, 0
      %p215 = por %p213, %p214
      %s217 = sadd.s32 %s216, 1
      %p220 = scmp.eq.s32.totalorder %s25, 1
      %p221 = scmp.ne.s32.totalorder %s216, %s218
      %p222 = scmp.eq.s32.totalorder %s25, 0
      %p223 = por %p221, %p222
      %p224 = scmp.ne.s32.totalorder %s216, %s218
      %p225 = scmp.eq.s32.totalorder %s30, 1
      %p226 = por %p224, %p225
      %p227 = scmp.ne.s32.totalorder %s218, %s219
      %p228 = scmp.eq.s32.totalorder %s30, 0
      %p229 = por %p227, %p228
      %p230 = scmp.ne.s32.totalorder %s218, %s219
      %p231 = scmp.eq.s32.totalorder %s31, 1
      %p232 = por %p230, %p231
      %p234 = scmp.ne.s32.totalorder %s219, %s233
      %p235 = scmp.eq.s32.totalorder %s31, 0
      %p236 = por %p234, %p235
      %s238 = sadd.s32 %s237, 1
      %p241 = scmp.eq.s32.totalorder %s25, 1
      %p242 = scmp.ne.s32.totalorder %s237, %s239
      %p243 = scmp.eq.s32.totalorder %s25, 0
      %p244 = por %p242, %p243
      %p245 = scmp.ne.s32.totalorder %s237, %s239
      %p246 = scmp.eq.s32.totalorder %s30, 1
      %p247 = por %p245, %p246
      %p248 = scmp.ne.s32.totalorder %s239, %s240
      %p249 = scmp.eq.s32.totalorder %s30, 0
      %p250 = por %p248, %p249
      %p251 = scmp.ne.s32.totalorder %s239, %s240
      %p252 = scmp.eq.s32.totalorder %s31, 1
      %p253 = por %p251, %p252
      %p255 = scmp.ne.s32.totalorder %s240, %s254
      %p256 = scmp.eq.s32.totalorder %s31, 0
      %p257 = por %p255, %p256
      %s258 = ssub.s32 %s25, %s32
      %p259 = scmp.eq.s32.totalorder %s258, 0
      %s261 = sadd.s32 %s260, 1
      %s262 = scalar_select %p259, %s260, %s261
      %p265 = pneg %p259
      %p266 = scmp.eq.s32.totalorder %s25, 1
      %p267 = por %p265, %p266
      %p268 = scmp.ne.s32.totalorder %s260, %s263
      %p269 = scmp.eq.s32.totalorder %s25, 0
      %p270 = por %p268, %p269
      %p271 = scmp.ne.s32.totalorder %s260, %s263
      %p272 = scmp.eq.s32.totalorder %s30, 1
      %p273 = por %p271, %p272
      %p274 = scmp.ne.s32.totalorder %s263, %s264
      %p275 = scmp.eq.s32.totalorder %s30, 0
      %p276 = por %p274, %p275
      %p277 = scmp.ne.s32.totalorder %s263, %s264
      %p278 = scmp.eq.s32.totalorder %s31, 1
      %p279 = por %p277, %p278
      %p281 = scmp.ne.s32.totalorder %s264, %s280
      %p282 = scmp.eq.s32.totalorder %s31, 0
      %p283 = por %p281, %p282
      %p284 = scmp.le.s32.totalorder 1, %s25
      %p285 = scmp.lt.s32.totalorder %s25, 3
      %p286 = pnand %p284, %p285
      %p287 = pneg %p286
      // Predicated region
      $region9: #{tpu_custom_call.1} parent=5 // pred_check
        _
      $region10: #{tpu_custom_call.1} parent=5 // pred_check_branch
        %289 = sbr.rel (%p286) target = $region12
      $region11: #{tpu_custom_call.1} parent=5 // pred_region
        %s290 = ssub.s32 %s25, 1
        // Predicated region
        $region13: #{tpu_custom_call.1} parent=11 // pred_check
          %p291 = pneg %p124
        $region14: #{tpu_custom_call.1} parent=11 // pred_check_branch
          %293 = sbr.rel (%p291) target = $region16
        $region15: #{tpu_custom_call.1} parent=11 // pred_region
          _
        $region16: #{tpu_custom_call.1} parent=11 // pred_fallthru
          _
        // Predicated region
        $region17: #{tpu_custom_call.1} parent=11 // pred_check
          %p294 = pneg %p145
        $region18: #{tpu_custom_call.1} parent=11 // pred_check_branch
          %296 = sbr.rel (%p294) target = $region20
        $region19: #{tpu_custom_call.1} parent=11 // pred_region
          _
        $region20: #{tpu_custom_call.1} parent=11 // pred_fallthru
          _
        // Predicated region
        $region21: #{tpu_custom_call.1} parent=11 // pred_check
          %p297 = pneg %p166
        $region22: #{tpu_custom_call.1} parent=11 // pred_check_branch
          %299 = sbr.rel (%p297) target = $region24
        $region23: #{tpu_custom_call.1} parent=11 // pred_region
          _
        $region24: #{tpu_custom_call.1} parent=11 // pred_fallthru
          _
        // Predicated region
        $region25: #{tpu_custom_call.1} parent=11 // pred_check
          %p300 = pneg %p187
        $region26: #{tpu_custom_call.1} parent=11 // pred_check_branch
          %302 = sbr.rel (%p300) target = $region28
        $region27: #{tpu_custom_call.1} parent=11 // pred_region
          _
        $region28: #{tpu_custom_call.1} parent=11 // pred_fallthru
          _
        // Predicated region
        $region29: #{tpu_custom_call.1} parent=11 // pred_check
          %p303 = pneg %p208
        $region30: #{tpu_custom_call.1} parent=11 // pred_check_branch
          %305 = sbr.rel (%p303) target = $region32
        $region31: #{tpu_custom_call.1} parent=11 // pred_region
          _
        $region32: #{tpu_custom_call.1} parent=11 // pred_fallthru
          _
        // Predicated region
        $region33: #{tpu_custom_call.1} parent=11 // pred_check
          %p306 = pneg %p229
        $region34: #{tpu_custom_call.1} parent=11 // pred_check_branch
          %308 = sbr.rel (%p306) target = $region36
        $region35: #{tpu_custom_call.1} parent=11 // pred_region
          _
        $region36: #{tpu_custom_call.1} parent=11 // pred_fallthru
          _
        // Predicated region
        $region37: #{tpu_custom_call.1} parent=11 // pred_check
          %p309 = pneg %p250
        $region38: #{tpu_custom_call.1} parent=11 // pred_check_branch
          %311 = sbr.rel (%p309) target = $region40
        $region39: #{tpu_custom_call.1} parent=11 // pred_region
          _
        $region40: #{tpu_custom_call.1} parent=11 // pred_fallthru
          _
      $region12: #{tpu_custom_call.1} parent=5 // pred_fallthru
        _
      %p312 = scmp.lt.s32.totalorder %s25, 2
      // Predicated region
      $region41: #{tpu_custom_call.1} parent=5 // pred_check
        %p313 = pneg %p312
      $region42: #{tpu_custom_call.1} parent=5 // pred_check_branch
        %315 = sbr.rel (%p313) target = $region44
      $region43: #{tpu_custom_call.1} parent=5 // pred_region
        // Predicated region
        $region45: #{tpu_custom_call.1} parent=43 // pred_check
          %p316 = pneg %p45
        $region46: #{tpu_custom_call.1} parent=43 // pred_check_branch
          %318 = sbr.rel (%p316) target = $region48
        $region47: #{tpu_custom_call.1} parent=43 // pred_region
          %s319 = sand.u32 %s35, 1
          %s320 = scalar_lea.sflag [#allocation3], %s319
          %s321 = sand.u32 %s35, 1
          %s322 = smul.addr %s321, 8
          %s323 = scalar_lea.vmem [#allocation2], %s322
          %s325 = ssub.s32 128, 128
          %326 = vsyncadd %s320, %s325
          %s327 = smul.addr %s25, 128
          %s328 = scalar_lea.hbm %s0, %s327
          %s330 = sshll.u32 %s323, 4
          %s331 = int_to_ptr.vmem [resolvable:$true] %s330
          %333 = dma.hbm_to_vmem [thread:$0]  %s328, 128, %s331, %s320
        $region48: #{tpu_custom_call.1} parent=43 // pred_fallthru
          _
        // Predicated region
        $region49: #{tpu_custom_call.1} parent=43 // pred_check
          %p334 = pneg %p71
        $region50: #{tpu_custom_call.1} parent=43 // pred_check_branch
          %336 = sbr.rel (%p334) target = $region52
        $region51: #{tpu_custom_call.1} parent=43 // pred_region
          %s337 = sand.u32 %s25, 1
          %s338 = scalar_lea.sflag [#allocation6], %s337
          %s339 = sand.u32 %s61, 1
          %s340 = smul.addr %s339, 8
          %s341 = scalar_lea.vmem [#allocation5], %s340
          %s343 = ssub.s32 128, 128
          %344 = vsyncadd %s338, %s343
          %s345 = smul.addr %s25, 128
          %s346 = scalar_lea.hbm %s1, %s345
          %s348 = sshll.u32 %s341, 4
          %s349 = int_to_ptr.vmem [resolvable:$true] %s348
          %351 = dma.hbm_to_vmem [thread:$0]  %s346, 128, %s349, %s338
        $region52: #{tpu_custom_call.1} parent=43 // pred_fallthru
          _
        // Predicated region
        $region53: #{tpu_custom_call.1} parent=43 // pred_check
          %p352 = pneg %p97
        $region54: #{tpu_custom_call.1} parent=43 // pred_check_branch
          %354 = sbr.rel (%p352) target = $region56
        $region55: #{tpu_custom_call.1} parent=43 // pred_region
          %s355 = sand.u32 %s25, 1
          %s356 = scalar_lea.sflag [#allocation6], %s355
          %s357 = sand.u32 %s87, 1
          %s358 = smul.addr %s357, 8
          %s359 = scalar_lea.vmem [#allocation7], %s358
          %s361 = ssub.s32 128, 128
          %362 = vsyncadd %s356, %s361
          %s363 = smul.addr %s25, 128
          %s364 = scalar_lea.hbm %s2, %s363
          %s366 = sshll.u32 %s359, 4
          %s367 = int_to_ptr.vmem [resolvable:$true] %s366
          %369 = dma.hbm_to_vmem [thread:$0]  %s364, 128, %s367, %s356
        $region56: #{tpu_custom_call.1} parent=43 // pred_fallthru
          _
      $region44: #{tpu_custom_call.1} parent=5 // pred_fallthru
        _
      %p370 = scmp.le.s32.totalorder 1, %s25
      %p371 = scmp.lt.s32.totalorder %s25, 3
      %p372 = pnand %p370, %p371
      %p373 = pneg %p372
      // Predicated region
      $region57: #{tpu_custom_call.1} parent=5 // pred_check
        _
      $region58: #{tpu_custom_call.1} parent=5 // pred_check_branch
        %375 = sbr.rel (%p372) target = $region60
      $region59: #{tpu_custom_call.1} parent=5 // pred_region
        %s376 = ssub.s32 %s25, 1
        %s377 = sand.u32 %s38, 1
        %s378 = scalar_lea.sflag [#allocation3], %s377
        %s379 = sand.u32 %s38, 1
        %s380 = smul.addr %s379, 8
        %s381 = scalar_lea.vmem [#allocation2], %s380
        // Predicated region
        $region61: #{tpu_custom_call.1} parent=59 // pred_check
          %p382 = pneg %p51
        $region62: #{tpu_custom_call.1} parent=59 // pred_check_branch
          %384 = sbr.rel (%p382) target = $region64
        $region63: #{tpu_custom_call.1} parent=59 // pred_region
          %385 = dma.done %s378, 128
        $region64: #{tpu_custom_call.1} parent=59 // pred_fallthru
          _
        %s386 = sand.u32 %s30, 1
        %s387 = scalar_lea.sflag [#allocation6], %s386
        %s388 = sand.u32 %s64, 1
        %s389 = smul.addr %s388, 8
        %s390 = scalar_lea.vmem [#allocation5], %s389
        // Predicated region
        $region65: #{tpu_custom_call.1} parent=59 // pred_check
          %p391 = pneg %p77
        $region66: #{tpu_custom_call.1} parent=59 // pred_check_branch
          %393 = sbr.rel (%p391) target = $region68
        $region67: #{tpu_custom_call.1} parent=59 // pred_region
          %394 = dma.done %s387, 128
        $region68: #{tpu_custom_call.1} parent=59 // pred_fallthru
          _
        %s395 = sand.u32 %s30, 1
        %s396 = scalar_lea.sflag [#allocation6], %s395
        %s397 = sand.u32 %s90, 1
        %s398 = smul.addr %s397, 8
        %s399 = scalar_lea.vmem [#allocation7], %s398
        // Predicated region
        $region69: #{tpu_custom_call.1} parent=59 // pred_check
          %p400 = pneg %p103
        $region70: #{tpu_custom_call.1} parent=59 // pred_check_branch
          %402 = sbr.rel (%p400) target = $region72
        $region71: #{tpu_custom_call.1} parent=59 // pred_region
          %403 = dma.done %s396, 128
        $region72: #{tpu_custom_call.1} parent=59 // pred_fallthru
          _
        %s404 = sand.u32 %s38, 1
        %s405 = scalar_lea.sflag [#allocation3], %s404
        %s406 = sand.u32 %s38, 1
        %s407 = smul.addr %s406, 8
        %s408 = scalar_lea.vmem [#allocation2], %s407
        %p409 = pneg %p51
        %p410 = pneg %p48
        %s411 = sand.u32 %s30, 1
        %s412 = scalar_lea.sflag [#allocation6], %s411
        %s413 = sand.u32 %s64, 1
        %s414 = smul.addr %s413, 8
        %s415 = scalar_lea.vmem [#allocation5], %s414
        %p416 = pneg %p77
        %p417 = pneg %p74
        %s418 = sand.u32 %s30, 1
        %s419 = scalar_lea.sflag [#allocation6], %s418
        %s420 = sand.u32 %s90, 1
        %s421 = smul.addr %s420, 8
        %s422 = scalar_lea.vmem [#allocation7], %s421
        %p423 = pneg %p103
        %p424 = pneg %p100
        %p425 = pneg %p124
        %p426 = pneg %p121
        %p427 = pneg %p145
        %p428 = pneg %p142
        %p429 = pneg %p166
        %p430 = pneg %p163
        %p431 = pneg %p187
        %p432 = pneg %p184
        %p433 = pneg %p208
        %p434 = pneg %p205
        %p435 = pneg %p229
        %p436 = pneg %p226
        %p437 = pneg %p250
        %p438 = pneg %p247
        %p439 = pneg %p276
        %p440 = pneg %p273
        %s441 = sand.u32 %s263, 1
        %s442 = scalar_lea.sflag [#allocation4], %s441
        %s443 = sand.u32 %s263, 1
        %s444 = smul.addr %s443, 8
        %s445 = scalar_lea.vmem [#allocation8], %s444
        %v446 = vld [vmem:[%s381] sm:$0xff]
        %v447 = vld [vmem:[%s3] sm:$0xff]
        %v448 = vld [vmem:[%s3 + $0x8] sm:$0xff]
        %v449 = vld [vmem:[%s3 + $0x10] sm:$0xff]
        %v450 = vld [vmem:[%s3 + $0x18] sm:$0xff]
        %vm451 = vcmask 261120
        %v453 = vsel %vm451, %v446, 0
        %455 = vmatprep.subr.mxu0 0.0
        %456 = vmatpush1.msra.mxu0 %v447
        %457 = vmatprep.subr.mxu0 0.0
        %458 = vmatpush1.msra.mxu0 %v448
        %459 = vmatprep.subr.mxu0 0.0
        %460 = vmatpush1.msra.mxu0 %v449
        %461 = vmatprep.subr.mxu0 0.0
        %462 = vmatpush1.msra.mxu0 %v450
        %463 = vmatprep.subr.mxu0 0.0
        %464 = vmatpush1.msra.mxu0 0.0
        %465 = vmatprep.subr.mxu0 0.0
        %466 = vmatpush1.msra.mxu0 0.0
        %467 = vmatprep.subr.mxu0 0.0
        %468 = vmatpush1.msra.mxu0 0.0
        %469 = vmatprep.subr.mxu0 0.0
        %470 = vmatpush1.msra.mxu0 0.0
        %471 = vmatprep.subr.mxu0 0.0
        %472 = vmatpush1.msra.mxu0 0.0
        %473 = vmatprep.subr.mxu0 0.0
        %474 = vmatpush1.msra.mxu0 0.0
        %475 = vmatprep.subr.mxu0 0.0
        %476 = vmatpush1.msra.mxu0 0.0
        %477 = vmatprep.subr.mxu0 0.0
        %478 = vmatpush1.msra.mxu0 0.0
        %479 = vmatprep.subr.mxu0 0.0
        %480 = vmatpush1.msra.mxu0 0.0
        %481 = vmatprep.subr.mxu0 0.0
        %482 = vmatpush1.msra.mxu0 0.0
        %483 = vmatprep.subr.mxu0 0.0
        %484 = vmatpush1.msra.mxu0 0.0
        %485 = vmatprep.subr.mxu0 0.0
        %486 = vmatpush1.msra.mxu0 0.0
        %487 = vmatprep.subr.mxu0 0.0
        %488 = vmatpush1.msra.mxu0 0.0
        %489 = vmatprep.subr.mxu0 0.0
        %490 = vmatpush1.msra.mxu0 0.0
        %491 = vmatprep.subr.mxu0 0.0
        %492 = vmatpush1.msra.mxu0 0.0
        %493 = vmatprep.subr.mxu0 0.0
        %494 = vmatpush1.msra.mxu0 0.0
        %495 = vmatprep.subr.mxu0 0.0
        %496 = vmatpush1.msra.mxu0 0.0
        %497 = vmatprep.subr.mxu0 0.0
        %498 = vmatpush1.msra.mxu0 0.0
        %499 = vmatprep.subr.mxu0 0.0
        %500 = vmatpush1.msra.mxu0 0.0
        %501 = vmatprep.subr.mxu0 0.0
        %502 = vmatpush1.msra.mxu0 0.0
        %503 = vmatprep.subr.mxu0 0.0
        %504 = vmatpush1.msra.mxu0 0.0
        %505 = vmatprep.subr.mxu0 0.0
        %506 = vmatpush1.msra.mxu0 0.0
        %507 = vmatprep.subr.mxu0 0.0
        %508 = vmatpush1.msra.mxu0 0.0
        %509 = vmatprep.subr.mxu0 0.0
        %510 = vmatpush1.msra.mxu0 0.0
        %511 = vmatprep.subr.mxu0 0.0
        %512 = vmatpush1.msra.mxu0 0.0
        %513 = vmatprep.subr.mxu0 0.0
        %514 = vmatpush1.msra.mxu0 0.0
        %515 = vmatprep.subr.mxu0 0.0
        %516 = vmatpush1.msra.mxu0 0.0
        %517 = vmatprep.subr.mxu0 0.0
        %518 = vmatpush1.msra.mxu0 0.0
        %519 = vmatprep.mubr.f32.mxu0 0.0
        %520 = vmatmul.mubr.f32.gmra.mrb[0].mxu0 %v453
        %v521 = vpop.f32.mrb[0].mxu0
        %v522 = vadd.f32 0.0, %v521
        %v523 = vpop.f32.mrb[0].mxu0
        %524 = vdwg.mxu0
        %v525 = vld [vmem:[%s390] sm:$0xff]
        %v526 = vld [vmem:[%s4] sm:$0xff]
        %v527 = vld [vmem:[%s4 + $0x8] sm:$0xff]
        %v528 = vld [vmem:[%s4 + $0x10] sm:$0xff]
        %v529 = vld [vmem:[%s4 + $0x18] sm:$0xff]
        %v531 = vsel %vm451, %v525, 0
        %533 = vmatprep.subr.mxu0 0.0
        %534 = vmatpush1.msra.mxu0 %v526
        %535 = vmatprep.subr.mxu0 0.0
        %536 = vmatpush1.msra.mxu0 %v527
        %537 = vmatprep.subr.mxu0 0.0
        %538 = vmatpush1.msra.mxu0 %v528
        %539 = vmatprep.subr.mxu0 0.0
        %540 = vmatpush1.msra.mxu0 %v529
        %541 = vmatprep.subr.mxu0 0.0
        %542 = vmatpush1.msra.mxu0 0.0
        %543 = vmatprep.subr.mxu0 0.0
        %544 = vmatpush1.msra.mxu0 0.0
        %545 = vmatprep.subr.mxu0 0.0
        %546 = vmatpush1.msra.mxu0 0.0
        %547 = vmatprep.subr.mxu0 0.0
        %548 = vmatpush1.msra.mxu0 0.0
        %549 = vmatprep.subr.mxu0 0.0
        %550 = vmatpush1.msra.mxu0 0.0
        %551 = vmatprep.subr.mxu0 0.0
        %552 = vmatpush1.msra.mxu0 0.0
        %553 = vmatprep.subr.mxu0 0.0
        %554 = vmatpush1.msra.mxu0 0.0
        %555 = vmatprep.subr.mxu0 0.0
        %556 = vmatpush1.msra.mxu0 0.0
        %557 = vmatprep.subr.mxu0 0.0
        %558 = vmatpush1.msra.mxu0 0.0
        %559 = vmatprep.subr.mxu0 0.0
        %560 = vmatpush1.msra.mxu0 0.0
        %561 = vmatprep.subr.mxu0 0.0
        %562 = vmatpush1.msra.mxu0 0.0
        %563 = vmatprep.subr.mxu0 0.0
        %564 = vmatpush1.msra.mxu0 0.0
        %565 = vmatprep.subr.mxu0 0.0
        %566 = vmatpush1.msra.mxu0 0.0
        %567 = vmatprep.subr.mxu0 0.0
        %568 = vmatpush1.msra.mxu0 0.0
        %569 = vmatprep.subr.mxu0 0.0
        %570 = vmatpush1.msra.mxu0 0.0
        %571 = vmatprep.subr.mxu0 0.0
        %572 = vmatpush1.msra.mxu0 0.0
        %573 = vmatprep.subr.mxu0 0.0
        %574 = vmatpush1.msra.mxu0 0.0
        %575 = vmatprep.subr.mxu0 0.0
        %576 = vmatpush1.msra.mxu0 0.0
        %577 = vmatprep.subr.mxu0 0.0
        %578 = vmatpush1.msra.mxu0 0.0
        %579 = vmatprep.subr.mxu0 0.0
        %580 = vmatpush1.msra.mxu0 0.0
        %581 = vmatprep.subr.mxu0 0.0
        %582 = vmatpush1.msra.mxu0 0.0
        %583 = vmatprep.subr.mxu0 0.0
        %584 = vmatpush1.msra.mxu0 0.0
        %585 = vmatprep.subr.mxu0 0.0
        %586 = vmatpush1.msra.mxu0 0.0
        %587 = vmatprep.subr.mxu0 0.0
        %588 = vmatpush1.msra.mxu0 0.0
        %589 = vmatprep.subr.mxu0 0.0
        %590 = vmatpush1.msra.mxu0 0.0
        %591 = vmatprep.subr.mxu0 0.0
        %592 = vmatpush1.msra.mxu0 0.0
        %593 = vmatprep.subr.mxu0 0.0
        %594 = vmatpush1.msra.mxu0 0.0
        %595 = vmatprep.subr.mxu0 0.0
        %596 = vmatpush1.msra.mxu0 0.0
        %597 = vmatprep.mubr.f32.mxu0 0.0
        %598 = vmatmul.mubr.f32.gmra.mrb[0].mxu0 %v531
        %v599 = vpop.f32.mrb[0].mxu0
        %v600 = vadd.f32 0.0, %v599
        %v601 = vpop.f32.mrb[0].mxu0
        %602 = vdwg.mxu0
        %v603 = vld [vmem:[%s399] sm:$0xff]
        %v604 = vld [vmem:[%s5] sm:$0xff]
        %v605 = vld [vmem:[%s5 + $0x8] sm:$0xff]
        %v606 = vld [vmem:[%s5 + $0x10] sm:$0xff]
        %v607 = vld [vmem:[%s5 + $0x18] sm:$0xff]
        %v609 = vsel %vm451, %v603, 0
        %611 = vmatprep.subr.mxu0 0.0
        %612 = vmatpush1.msra.mxu0 %v604
        %613 = vmatprep.subr.mxu0 0.0
        %614 = vmatpush1.msra.mxu0 %v605
        %615 = vmatprep.subr.mxu0 0.0
        %616 = vmatpush1.msra.mxu0 %v606
        %617 = vmatprep.subr.mxu0 0.0
        %618 = vmatpush1.msra.mxu0 %v607
        %619 = vmatprep.subr.mxu0 0.0
        %620 = vmatpush1.msra.mxu0 0.0
        %621 = vmatprep.subr.mxu0 0.0
        %622 = vmatpush1.msra.mxu0 0.0
        %623 = vmatprep.subr.mxu0 0.0
        %624 = vmatpush1.msra.mxu0 0.0
        %625 = vmatprep.subr.mxu0 0.0
        %626 = vmatpush1.msra.mxu0 0.0
        %627 = vmatprep.subr.mxu0 0.0
        %628 = vmatpush1.msra.mxu0 0.0
        %629 = vmatprep.subr.mxu0 0.0
        %630 = vmatpush1.msra.mxu0 0.0
        %631 = vmatprep.subr.mxu0 0.0
        %632 = vmatpush1.msra.mxu0 0.0
        %633 = vmatprep.subr.mxu0 0.0
        %634 = vmatpush1.msra.mxu0 0.0
        %635 = vmatprep.subr.mxu0 0.0
        %636 = vmatpush1.msra.mxu0 0.0
        %637 = vmatprep.subr.mxu0 0.0
        %638 = vmatpush1.msra.mxu0 0.0
        %639 = vmatprep.subr.mxu0 0.0
        %640 = vmatpush1.msra.mxu0 0.0
        %641 = vmatprep.subr.mxu0 0.0
        %642 = vmatpush1.msra.mxu0 0.0
        %643 = vmatprep.subr.mxu0 0.0
        %644 = vmatpush1.msra.mxu0 0.0
        %645 = vmatprep.subr.mxu0 0.0
        %646 = vmatpush1.msra.mxu0 0.0
        %647 = vmatprep.subr.mxu0 0.0
        %648 = vmatpush1.msra.mxu0 0.0
        %649 = vmatprep.subr.mxu0 0.0
        %650 = vmatpush1.msra.mxu0 0.0
        %651 = vmatprep.subr.mxu0 0.0
        %652 = vmatpush1.msra.mxu0 0.0
        %653 = vmatprep.subr.mxu0 0.0
        %654 = vmatpush1.msra.mxu0 0.0
        %655 = vmatprep.subr.mxu0 0.0
        %656 = vmatpush1.msra.mxu0 0.0
        %657 = vmatprep.subr.mxu0 0.0
        %658 = vmatpush1.msra.mxu0 0.0
        %659 = vmatprep.subr.mxu0 0.0
        %660 = vmatpush1.msra.mxu0 0.0
        %661 = vmatprep.subr.mxu0 0.0
        %662 = vmatpush1.msra.mxu0 0.0
        %663 = vmatprep.subr.mxu0 0.0
        %664 = vmatpush1.msra.mxu0 0.0
        %665 = vmatprep.subr.mxu0 0.0
        %666 = vmatpush1.msra.mxu0 0.0
        %667 = vmatprep.subr.mxu0 0.0
        %668 = vmatpush1.msra.mxu0 0.0
        %669 = vmatprep.subr.mxu0 0.0
        %670 = vmatpush1.msra.mxu0 0.0
        %671 = vmatprep.subr.mxu0 0.0
        %672 = vmatpush1.msra.mxu0 0.0
        %673 = vmatprep.subr.mxu0 0.0
        %674 = vmatpush1.msra.mxu0 0.0
        %675 = vmatprep.mubr.f32.mxu0 0.0
        %676 = vmatmul.mubr.f32.gmra.mrb[0].mxu0 %v609
        %v677 = vpop.f32.mrb[0].mxu0
        %v678 = vadd.f32 0.0, %v677
        %v679 = vpop.f32.mrb[0].mxu0
        %680 = vdwg.mxu0
        %vm681 = vcmask 130048
        %v683 = vsel %vm681, %v522, 0
        %v686 = vsel %vm681, %v600, 0
        %688 = vmatprep.subr.mxu0 0.0
        %689 = vmatpush1.xpose.msra.mxu0 %v686
        %690 = vmatprep.subr.mxu0 0.0
        %691 = vmatpush1.xpose.msra.mxu0 0.0
        %692 = vmatprep.subr.mxu0 0.0
        %693 = vmatpush1.xpose.msra.mxu0 0.0
        %694 = vmatprep.subr.mxu0 0.0
        %695 = vmatpush1.xpose.msra.mxu0 0.0
        %696 = vmatprep.subr.mxu0 0.0
        %697 = vmatpush1.xpose.msra.mxu0 0.0
        %698 = vmatprep.subr.mxu0 0.0
        %699 = vmatpush1.xpose.msra.mxu0 0.0
        %700 = vmatprep.subr.mxu0 0.0
        %701 = vmatpush1.xpose.msra.mxu0 0.0
        %702 = vmatprep.subr.mxu0 0.0
        %703 = vmatpush1.xpose.msra.mxu0 0.0
        %704 = vmatprep.subr.mxu0 0.0
        %705 = vmatpush1.xpose.msra.mxu0 0.0
        %706 = vmatprep.subr.mxu0 0.0
        %707 = vmatpush1.xpose.msra.mxu0 0.0
        %708 = vmatprep.subr.mxu0 0.0
        %709 = vmatpush1.xpose.msra.mxu0 0.0
        %710 = vmatprep.subr.mxu0 0.0
        %711 = vmatpush1.xpose.msra.mxu0 0.0
        %712 = vmatprep.subr.mxu0 0.0
        %713 = vmatpush1.xpose.msra.mxu0 0.0
        %714 = vmatprep.subr.mxu0 0.0
        %715 = vmatpush1.xpose.msra.mxu0 0.0
        %716 = vmatprep.subr.mxu0 0.0
        %717 = vmatpush1.xpose.msra.mxu0 0.0
        %718 = vmatprep.subr.mxu0 0.0
        %719 = vmatpush1.xpose.msra.mxu0 0.0
        %720 = vmatprep.subr.mxu0 0.0
        %721 = vmatpush1.xpose.msra.mxu0 0.0
        %722 = vmatprep.subr.mxu0 0.0
        %723 = vmatpush1.xpose.msra.mxu0 0.0
        %724 = vmatprep.subr.mxu0 0.0
        %725 = vmatpush1.xpose.msra.mxu0 0.0
        %726 = vmatprep.subr.mxu0 0.0
        %727 = vmatpush1.xpose.msra.mxu0 0.0
        %728 = vmatprep.subr.mxu0 0.0
        %729 = vmatpush1.xpose.msra.mxu0 0.0
        %730 = vmatprep.subr.mxu0 0.0
        %731 = vmatpush1.xpose.msra.mxu0 0.0
        %732 = vmatprep.subr.mxu0 0.0
        %733 = vmatpush1.xpose.msra.mxu0 0.0
        %734 = vmatprep.subr.mxu0 0.0
        %735 = vmatpush1.xpose.msra.mxu0 0.0
        %736 = vmatprep.subr.mxu0 0.0
        %737 = vmatpush1.xpose.msra.mxu0 0.0
        %738 = vmatprep.subr.mxu0 0.0
        %739 = vmatpush1.xpose.msra.mxu0 0.0
        %740 = vmatprep.subr.mxu0 0.0
        %741 = vmatpush1.xpose.msra.mxu0 0.0
        %742 = vmatprep.subr.mxu0 0.0
        %743 = vmatpush1.xpose.msra.mxu0 0.0
        %744 = vmatprep.subr.mxu0 0.0
        %745 = vmatpush1.xpose.msra.mxu0 0.0
        %746 = vmatprep.subr.mxu0 0.0
        %747 = vmatpush1.xpose.msra.mxu0 0.0
        %748 = vmatprep.subr.mxu0 0.0
        %749 = vmatpush1.xpose.msra.mxu0 0.0
        %750 = vmatprep.subr.mxu0 0.0
        %751 = vmatpush1.xpose.msra.mxu0 0.0
        %752 = vmatprep.mubr.f32.mxu0 0.0
        %753 = vmatmul.mubr.f32.gmra.mrb[0].mxu0 %v683
        %v754 = vpop.f32.mrb[0].mxu0
        %v755 = vadd.f32 0.0, %v754
        %v756 = vpop.f32.mrb[0].mxu0
        %757 = vdwg.mxu0
        %vm758 = vcmask 64512
        %v759 = vsel %vm758, %v755, -inf
        %760 = vmax.xlane.f32.xlu0 %v759
        %v761 = vpop.xlane.xlu0 %760
        %v762 = vsub.f32 %v755, %v761
        %v763 = vmul.f32 %v762, 1.442695
        %v764 = vpow.pop %v763
        %v765 = vsel %vm758, %v764, 0.0
        %766 = vadd.xlane.f32.xlu0 %v765
        %v767 = vpop.xlane.xlu0 %766
        %v768 = vrcp.pop %v767
        %v769 = vmul.f32 %v764, %v768
        %v771 = vsel %vm758, %v769, 0
        %773 = vmatprep.subr.mxu0 0.0
        %774 = vmatpush1.msra.mxu0 %v678
        %775 = vmatprep.subr.mxu0 0.0
        %776 = vmatpush1.msra.mxu0 0.0
        %777 = vmatprep.subr.mxu0 0.0
        %778 = vmatpush1.msra.mxu0 0.0
        %779 = vmatprep.subr.mxu0 0.0
        %780 = vmatpush1.msra.mxu0 0.0
        %781 = vmatprep.subr.mxu0 0.0
        %782 = vmatpush1.msra.mxu0 0.0
        %783 = vmatprep.subr.mxu0 0.0
        %784 = vmatpush1.msra.mxu0 0.0
        %785 = vmatprep.subr.mxu0 0.0
        %786 = vmatpush1.msra.mxu0 0.0
        %787 = vmatprep.subr.mxu0 0.0
        %788 = vmatpush1.msra.mxu0 0.0
        %789 = vmatprep.subr.mxu0 0.0
        %790 = vmatpush1.msra.mxu0 0.0
        %791 = vmatprep.subr.mxu0 0.0
        %792 = vmatpush1.msra.mxu0 0.0
        %793 = vmatprep.subr.mxu0 0.0
        %794 = vmatpush1.msra.mxu0 0.0
        %795 = vmatprep.subr.mxu0 0.0
        %796 = vmatpush1.msra.mxu0 0.0
        %797 = vmatprep.subr.mxu0 0.0
        %798 = vmatpush1.msra.mxu0 0.0
        %799 = vmatprep.subr.mxu0 0.0
        %800 = vmatpush1.msra.mxu0 0.0
        %801 = vmatprep.subr.mxu0 0.0
        %802 = vmatpush1.msra.mxu0 0.0
        %803 = vmatprep.subr.mxu0 0.0
        %804 = vmatpush1.msra.mxu0 0.0
        %805 = vmatprep.subr.mxu0 0.0
        %806 = vmatpush1.msra.mxu0 0.0
        %807 = vmatprep.subr.mxu0 0.0
        %808 = vmatpush1.msra.mxu0 0.0
        %809 = vmatprep.subr.mxu0 0.0
        %810 = vmatpush1.msra.mxu0 0.0
        %811 = vmatprep.subr.mxu0 0.0
        %812 = vmatpush1.msra.mxu0 0.0
        %813 = vmatprep.subr.mxu0 0.0
        %814 = vmatpush1.msra.mxu0 0.0
        %815 = vmatprep.subr.mxu0 0.0
        %816 = vmatpush1.msra.mxu0 0.0
        %817 = vmatprep.subr.mxu0 0.0
        %818 = vmatpush1.msra.mxu0 0.0
        %819 = vmatprep.subr.mxu0 0.0
        %820 = vmatpush1.msra.mxu0 0.0
        %821 = vmatprep.subr.mxu0 0.0
        %822 = vmatpush1.msra.mxu0 0.0
        %823 = vmatprep.subr.mxu0 0.0
        %824 = vmatpush1.msra.mxu0 0.0
        %825 = vmatprep.subr.mxu0 0.0
        %826 = vmatpush1.msra.mxu0 0.0
        %827 = vmatprep.subr.mxu0 0.0
        %828 = vmatpush1.msra.mxu0 0.0
        %829 = vmatprep.subr.mxu0 0.0
        %830 = vmatpush1.msra.mxu0 0.0
        %831 = vmatprep.subr.mxu0 0.0
        %832 = vmatpush1.msra.mxu0 0.0
        %833 = vmatprep.subr.mxu0 0.0
        %834 = vmatpush1.msra.mxu0 0.0
        %835 = vmatprep.subr.mxu0 0.0
        %836 = vmatpush1.msra.mxu0 0.0
        %837 = vmatprep.mubr.f32.mxu0 0.0
        %838 = vmatmul.mubr.f32.gmra.mrb[0].mxu0 %v771
        %v839 = vpop.f32.mrb[0].mxu0
        %v840 = vadd.f32 0.0, %v839
        %v841 = vpop.f32.mrb[0].mxu0
        %842 = vdwg.mxu0
        %843 = vrot.lane.b32.xlu0 %v522, 112
        %v844 = vpop.permute.xlu0 %843
        %845 = vrot.lane.b32.xlu0 %v600, 112
        %v846 = vpop.permute.xlu0 %845
        %v847 = vsel %vm681, %v844, 0
        %v849 = vsel %vm681, %v846, 0
        %851 = vmatprep.subr.mxu0 0.0
        %852 = vmatpush1.xpose.msra.mxu0 %v849
        %853 = vmatprep.subr.mxu0 0.0
        %854 = vmatpush1.xpose.msra.mxu0 0.0
        %855 = vmatprep.subr.mxu0 0.0
        %856 = vmatpush1.xpose.msra.mxu0 0.0
        %857 = vmatprep.subr.mxu0 0.0
        %858 = vmatpush1.xpose.msra.mxu0 0.0
        %859 = vmatprep.subr.mxu0 0.0
        %860 = vmatpush1.xpose.msra.mxu0 0.0
        %861 = vmatprep.subr.mxu0 0.0
        %862 = vmatpush1.xpose.msra.mxu0 0.0
        %863 = vmatprep.subr.mxu0 0.0
        %864 = vmatpush1.xpose.msra.mxu0 0.0
        %865 = vmatprep.subr.mxu0 0.0
        %866 = vmatpush1.xpose.msra.mxu0 0.0
        %867 = vmatprep.subr.mxu0 0.0
        %868 = vmatpush1.xpose.msra.mxu0 0.0
        %869 = vmatprep.subr.mxu0 0.0
        %870 = vmatpush1.xpose.msra.mxu0 0.0
        %871 = vmatprep.subr.mxu0 0.0
        %872 = vmatpush1.xpose.msra.mxu0 0.0
        %873 = vmatprep.subr.mxu0 0.0
        %874 = vmatpush1.xpose.msra.mxu0 0.0
        %875 = vmatprep.subr.mxu0 0.0
        %876 = vmatpush1.xpose.msra.mxu0 0.0
        %877 = vmatprep.subr.mxu0 0.0
        %878 = vmatpush1.xpose.msra.mxu0 0.0
        %879 = vmatprep.subr.mxu0 0.0
        %880 = vmatpush1.xpose.msra.mxu0 0.0
        %881 = vmatprep.subr.mxu0 0.0
        %882 = vmatpush1.xpose.msra.mxu0 0.0
        %883 = vmatprep.subr.mxu0 0.0
        %884 = vmatpush1.xpose.msra.mxu0 0.0
        %885 = vmatprep.subr.mxu0 0.0
        %886 = vmatpush1.xpose.msra.mxu0 0.0
        %887 = vmatprep.subr.mxu0 0.0
        %888 = vmatpush1.xpose.msra.mxu0 0.0
        %889 = vmatprep.subr.mxu0 0.0
        %890 = vmatpush1.xpose.msra.mxu0 0.0
        %891 = vmatprep.subr.mxu0 0.0
        %892 = vmatpush1.xpose.msra.mxu0 0.0
        %893 = vmatprep.subr.mxu0 0.0
        %894 = vmatpush1.xpose.msra.mxu0 0.0
        %895 = vmatprep.subr.mxu0 0.0
        %896 = vmatpush1.xpose.msra.mxu0 0.0
        %897 = vmatprep.subr.mxu0 0.0
        %898 = vmatpush1.xpose.msra.mxu0 0.0
        %899 = vmatprep.subr.mxu0 0.0
        %900 = vmatpush1.xpose.msra.mxu0 0.0
        %901 = vmatprep.subr.mxu0 0.0
        %902 = vmatpush1.xpose.msra.mxu0 0.0
        %903 = vmatprep.subr.mxu0 0.0
        %904 = vmatpush1.xpose.msra.mxu0 0.0
        %905 = vmatprep.subr.mxu0 0.0
        %906 = vmatpush1.xpose.msra.mxu0 0.0
        %907 = vmatprep.subr.mxu0 0.0
        %908 = vmatpush1.xpose.msra.mxu0 0.0
        %909 = vmatprep.subr.mxu0 0.0
        %910 = vmatpush1.xpose.msra.mxu0 0.0
        %911 = vmatprep.subr.mxu0 0.0
        %912 = vmatpush1.xpose.msra.mxu0 0.0
        %913 = vmatprep.subr.mxu0 0.0
        %914 = vmatpush1.xpose.msra.mxu0 0.0
        %915 = vmatprep.mubr.f32.mxu0 0.0
        %916 = vmatmul.mubr.f32.gmra.mrb[0].mxu0 %v847
        %v917 = vpop.f32.mrb[0].mxu0
        %v918 = vadd.f32 0.0, %v917
        %v919 = vpop.f32.mrb[0].mxu0
        %920 = vdwg.mxu0
        %v921 = vsel %vm758, %v918, -inf
        %922 = vmax.xlane.f32.xlu0 %v921
        %v923 = vpop.xlane.xlu0 %922
        %v924 = vsub.f32 %v918, %v923
        %v925 = vmul.f32 %v924, 1.442695
        %v926 = vpow.pop %v925
        %v927 = vsel %vm758, %v926, 0.0
        %928 = vadd.xlane.f32.xlu0 %v927
        %v929 = vpop.xlane.xlu0 %928
        %v930 = vrcp.pop %v929
        %v931 = vmul.f32 %v926, %v930
        %933 = vrot.lane.b32.xlu0 %v678, 112
        %v934 = vpop.permute.xlu0 %933
        %v937 = vsel %vm758, %v931, 0
        %939 = vmatprep.subr.mxu0 0.0
        %940 = vmatpush1.msra.mxu0 %v934
        %941 = vmatprep.subr.mxu0 0.0
        %942 = vmatpush1.msra.mxu0 0.0
        %943 = vmatprep.subr.mxu0 0.0
        %944 = vmatpush1.msra.mxu0 0.0
        %945 = vmatprep.subr.mxu0 0.0
        %946 = vmatpush1.msra.mxu0 0.0
        %947 = vmatprep.subr.mxu0 0.0
        %948 = vmatpush1.msra.mxu0 0.0
        %949 = vmatprep.subr.mxu0 0.0
        %950 = vmatpush1.msra.mxu0 0.0
        %951 = vmatprep.subr.mxu0 0.0
        %952 = vmatpush1.msra.mxu0 0.0
        %953 = vmatprep.subr.mxu0 0.0
        %954 = vmatpush1.msra.mxu0 0.0
        %955 = vmatprep.subr.mxu0 0.0
        %956 = vmatpush1.msra.mxu0 0.0
        %957 = vmatprep.subr.mxu0 0.0
        %958 = vmatpush1.msra.mxu0 0.0
        %959 = vmatprep.subr.mxu0 0.0
        %960 = vmatpush1.msra.mxu0 0.0
        %961 = vmatprep.subr.mxu0 0.0
        %962 = vmatpush1.msra.mxu0 0.0
        %963 = vmatprep.subr.mxu0 0.0
        %964 = vmatpush1.msra.mxu0 0.0
        %965 = vmatprep.subr.mxu0 0.0
        %966 = vmatpush1.msra.mxu0 0.0
        %967 = vmatprep.subr.mxu0 0.0
        %968 = vmatpush1.msra.mxu0 0.0
        %969 = vmatprep.subr.mxu0 0.0
        %970 = vmatpush1.msra.mxu0 0.0
        %971 = vmatprep.subr.mxu0 0.0
        %972 = vmatpush1.msra.mxu0 0.0
        %973 = vmatprep.subr.mxu0 0.0
        %974 = vmatpush1.msra.mxu0 0.0
        %975 = vmatprep.subr.mxu0 0.0
        %976 = vmatpush1.msra.mxu0 0.0
        %977 = vmatprep.subr.mxu0 0.0
        %978 = vmatpush1.msra.mxu0 0.0
        %979 = vmatprep.subr.mxu0 0.0
        %980 = vmatpush1.msra.mxu0 0.0
        %981 = vmatprep.subr.mxu0 0.0
        %982 = vmatpush1.msra.mxu0 0.0
        %983 = vmatprep.subr.mxu0 0.0
        %984 = vmatpush1.msra.mxu0 0.0
        %985 = vmatprep.subr.mxu0 0.0
        %986 = vmatpush1.msra.mxu0 0.0
        %987 = vmatprep.subr.mxu0 0.0
        %988 = vmatpush1.msra.mxu0 0.0
        %989 = vmatprep.subr.mxu0 0.0
        %990 = vmatpush1.msra.mxu0 0.0
        %991 = vmatprep.subr.mxu0 0.0
        %992 = vmatpush1.msra.mxu0 0.0
        %993 = vmatprep.subr.mxu0 0.0
        %994 = vmatpush1.msra.mxu0 0.0
        %995 = vmatprep.subr.mxu0 0.0
        %996 = vmatpush1.msra.mxu0 0.0
        %997 = vmatprep.subr.mxu0 0.0
        %998 = vmatpush1.msra.mxu0 0.0
        %999 = vmatprep.subr.mxu0 0.0
        %1000 = vmatpush1.msra.mxu0 0.0
        %1001 = vmatprep.subr.mxu0 0.0
        %1002 = vmatpush1.msra.mxu0 0.0
        %1003 = vmatprep.mubr.f32.mxu0 0.0
        %1004 = vmatmul.mubr.f32.gmra.mrb[0].mxu0 %v937
        %v1005 = vpop.f32.mrb[0].mxu0
        %v1006 = vadd.f32 0.0, %v1005
        %v1007 = vpop.f32.mrb[0].mxu0
        %1008 = vdwg.mxu0
        %1009 = vrot.lane.b32.xlu0 %v522, 96
        %v1010 = vpop.permute.xlu0 %1009
        %1011 = vrot.lane.b32.xlu0 %v600, 96
        %v1012 = vpop.permute.xlu0 %1011
        %v1013 = vsel %vm681, %v1010, 0
        %v1015 = vsel %vm681, %v1012, 0
        %1017 = vmatprep.subr.mxu0 0.0
        %1018 = vmatpush1.xpose.msra.mxu0 %v1015
        %1019 = vmatprep.subr.mxu0 0.0
        %1020 = vmatpush1.xpose.msra.mxu0 0.0
        %1021 = vmatprep.subr.mxu0 0.0
        %1022 = vmatpush1.xpose.msra.mxu0 0.0
        %1023 = vmatprep.subr.mxu0 0.0
        %1024 = vmatpush1.xpose.msra.mxu0 0.0
        %1025 = vmatprep.subr.mxu0 0.0
        %1026 = vmatpush1.xpose.msra.mxu0 0.0
        %1027 = vmatprep.subr.mxu0 0.0
        %1028 = vmatpush1.xpose.msra.mxu0 0.0
        %1029 = vmatprep.subr.mxu0 0.0
        %1030 = vmatpush1.xpose.msra.mxu0 0.0
        %1031 = vmatprep.subr.mxu0 0.0
        %1032 = vmatpush1.xpose.msra.mxu0 0.0
        %1033 = vmatprep.subr.mxu0 0.0
        %1034 = vmatpush1.xpose.msra.mxu0 0.0
        %1035 = vmatprep.subr.mxu0 0.0
        %1036 = vmatpush1.xpose.msra.mxu0 0.0
        %1037 = vmatprep.subr.mxu0 0.0
        %1038 = vmatpush1.xpose.msra.mxu0 0.0
        %1039 = vmatprep.subr.mxu0 0.0
        %1040 = vmatpush1.xpose.msra.mxu0 0.0
        %1041 = vmatprep.subr.mxu0 0.0
        %1042 = vmatpush1.xpose.msra.mxu0 0.0
        %1043 = vmatprep.subr.mxu0 0.0
        %1044 = vmatpush1.xpose.msra.mxu0 0.0
        %1045 = vmatprep.subr.mxu0 0.0
        %1046 = vmatpush1.xpose.msra.mxu0 0.0
        %1047 = vmatprep.subr.mxu0 0.0
        %1048 = vmatpush1.xpose.msra.mxu0 0.0
        %1049 = vmatprep.subr.mxu0 0.0
        %1050 = vmatpush1.xpose.msra.mxu0 0.0
        %1051 = vmatprep.subr.mxu0 0.0
        %1052 = vmatpush1.xpose.msra.mxu0 0.0
        %1053 = vmatprep.subr.mxu0 0.0
        %1054 = vmatpush1.xpose.msra.mxu0 0.0
        %1055 = vmatprep.subr.mxu0 0.0
        %1056 = vmatpush1.xpose.msra.mxu0 0.0
        %1057 = vmatprep.subr.mxu0 0.0
        %1058 = vmatpush1.xpose.msra.mxu0 0.0
        %1059 = vmatprep.subr.mxu0 0.0
        %1060 = vmatpush1.xpose.msra.mxu0 0.0
        %1061 = vmatprep.subr.mxu0 0.0
        %1062 = vmatpush1.xpose.msra.mxu0 0.0
        %1063 = vmatprep.subr.mxu0 0.0
        %1064 = vmatpush1.xpose.msra.mxu0 0.0
        %1065 = vmatprep.subr.mxu0 0.0
        %1066 = vmatpush1.xpose.msra.mxu0 0.0
        %1067 = vmatprep.subr.mxu0 0.0
        %1068 = vmatpush1.xpose.msra.mxu0 0.0
        %1069 = vmatprep.subr.mxu0 0.0
        %1070 = vmatpush1.xpose.msra.mxu0 0.0
        %1071 = vmatprep.subr.mxu0 0.0
        %1072 = vmatpush1.xpose.msra.mxu0 0.0
        %1073 = vmatprep.subr.mxu0 0.0
        %1074 = vmatpush1.xpose.msra.mxu0 0.0
        %1075 = vmatprep.subr.mxu0 0.0
        %1076 = vmatpush1.xpose.msra.mxu0 0.0
        %1077 = vmatprep.subr.mxu0 0.0
        %1078 = vmatpush1.xpose.msra.mxu0 0.0
        %1079 = vmatprep.subr.mxu0 0.0
        %1080 = vmatpush1.xpose.msra.mxu0 0.0
        %1081 = vmatprep.mubr.f32.mxu0 0.0
        %1082 = vmatmul.mubr.f32.gmra.mrb[0].mxu0 %v1013
        %v1083 = vpop.f32.mrb[0].mxu0
        %v1084 = vadd.f32 0.0, %v1083
        %v1085 = vpop.f32.mrb[0].mxu0
        %1086 = vdwg.mxu0
        %v1087 = vsel %vm758, %v1084, -inf
        %1088 = vmax.xlane.f32.xlu0 %v1087
        %v1089 = vpop.xlane.xlu0 %1088
        %v1090 = vsub.f32 %v1084, %v1089
        %v1091 = vmul.f32 %v1090, 1.442695
        %v1092 = vpow.pop %v1091
        %v1093 = vsel %vm758, %v1092, 0.0
        %1094 = vadd.xlane.f32.xlu0 %v1093
        %v1095 = vpop.xlane.xlu0 %1094
        %v1096 = vrcp.pop %v1095
        %v1097 = vmul.f32 %v1092, %v1096
        %1098 = vrot.lane.b32.xlu0 %v678, 96
        %v1099 = vpop.permute.xlu0 %1098
        %v1102 = vsel %vm758, %v1097, 0
        %1104 = vmatprep.subr.mxu0 0.0
        %1105 = vmatpush1.msra.mxu0 %v1099
        %1106 = vmatprep.subr.mxu0 0.0
        %1107 = vmatpush1.msra.mxu0 0.0
        %1108 = vmatprep.subr.mxu0 0.0
        %1109 = vmatpush1.msra.mxu0 0.0
        %1110 = vmatprep.subr.mxu0 0.0
        %1111 = vmatpush1.msra.mxu0 0.0
        %1112 = vmatprep.subr.mxu0 0.0
        %1113 = vmatpush1.msra.mxu0 0.0
        %1114 = vmatprep.subr.mxu0 0.0
        %1115 = vmatpush1.msra.mxu0 0.0
        %1116 = vmatprep.subr.mxu0 0.0
        %1117 = vmatpush1.msra.mxu0 0.0
        %1118 = vmatprep.subr.mxu0 0.0
        %1119 = vmatpush1.msra.mxu0 0.0
        %1120 = vmatprep.subr.mxu0 0.0
        %1121 = vmatpush1.msra.mxu0 0.0
        %1122 = vmatprep.subr.mxu0 0.0
        %1123 = vmatpush1.msra.mxu0 0.0
        %1124 = vmatprep.subr.mxu0 0.0
        %1125 = vmatpush1.msra.mxu0 0.0
        %1126 = vmatprep.subr.mxu0 0.0
        %1127 = vmatpush1.msra.mxu0 0.0
        %1128 = vmatprep.subr.mxu0 0.0
        %1129 = vmatpush1.msra.mxu0 0.0
        %1130 = vmatprep.subr.mxu0 0.0
        %1131 = vmatpush1.msra.mxu0 0.0
        %1132 = vmatprep.subr.mxu0 0.0
        %1133 = vmatpush1.msra.mxu0 0.0
        %1134 = vmatprep.subr.mxu0 0.0
        %1135 = vmatpush1.msra.mxu0 0.0
        %1136 = vmatprep.subr.mxu0 0.0
        %1137 = vmatpush1.msra.mxu0 0.0
        %1138 = vmatprep.subr.mxu0 0.0
        %1139 = vmatpush1.msra.mxu0 0.0
        %1140 = vmatprep.subr.mxu0 0.0
        %1141 = vmatpush1.msra.mxu0 0.0
        %1142 = vmatprep.subr.mxu0 0.0
        %1143 = vmatpush1.msra.mxu0 0.0
        %1144 = vmatprep.subr.mxu0 0.0
        %1145 = vmatpush1.msra.mxu0 0.0
        %1146 = vmatprep.subr.mxu0 0.0
        %1147 = vmatpush1.msra.mxu0 0.0
        %1148 = vmatprep.subr.mxu0 0.0
        %1149 = vmatpush1.msra.mxu0 0.0
        %1150 = vmatprep.subr.mxu0 0.0
        %1151 = vmatpush1.msra.mxu0 0.0
        %1152 = vmatprep.subr.mxu0 0.0
        %1153 = vmatpush1.msra.mxu0 0.0
        %1154 = vmatprep.subr.mxu0 0.0
        %1155 = vmatpush1.msra.mxu0 0.0
        %1156 = vmatprep.subr.mxu0 0.0
        %1157 = vmatpush1.msra.mxu0 0.0
        %1158 = vmatprep.subr.mxu0 0.0
        %1159 = vmatpush1.msra.mxu0 0.0
        %1160 = vmatprep.subr.mxu0 0.0
        %1161 = vmatpush1.msra.mxu0 0.0
        %1162 = vmatprep.subr.mxu0 0.0
        %1163 = vmatpush1.msra.mxu0 0.0
        %1164 = vmatprep.subr.mxu0 0.0
        %1165 = vmatpush1.msra.mxu0 0.0
        %1166 = vmatprep.subr.mxu0 0.0
        %1167 = vmatpush1.msra.mxu0 0.0
        %1168 = vmatprep.mubr.f32.mxu0 0.0
        %1169 = vmatmul.mubr.f32.gmra.mrb[0].mxu0 %v1102
        %v1170 = vpop.f32.mrb[0].mxu0
        %v1171 = vadd.f32 0.0, %v1170
        %v1172 = vpop.f32.mrb[0].mxu0
        %1173 = vdwg.mxu0
        %1174 = vrot.lane.b32.xlu0 %v522, 80
        %v1175 = vpop.permute.xlu0 %1174
        %1176 = vrot.lane.b32.xlu0 %v600, 80
        %v1177 = vpop.permute.xlu0 %1176
        %v1178 = vsel %vm681, %v1175, 0
        %v1180 = vsel %vm681, %v1177, 0
        %1182 = vmatprep.subr.mxu0 0.0
        %1183 = vmatpush1.xpose.msra.mxu0 %v1180
        %1184 = vmatprep.subr.mxu0 0.0
        %1185 = vmatpush1.xpose.msra.mxu0 0.0
        %1186 = vmatprep.subr.mxu0 0.0
        %1187 = vmatpush1.xpose.msra.mxu0 0.0
        %1188 = vmatprep.subr.mxu0 0.0
        %1189 = vmatpush1.xpose.msra.mxu0 0.0
        %1190 = vmatprep.subr.mxu0 0.0
        %1191 = vmatpush1.xpose.msra.mxu0 0.0
        %1192 = vmatprep.subr.mxu0 0.0
        %1193 = vmatpush1.xpose.msra.mxu0 0.0
        %1194 = vmatprep.subr.mxu0 0.0
        %1195 = vmatpush1.xpose.msra.mxu0 0.0
        %1196 = vmatprep.subr.mxu0 0.0
        %1197 = vmatpush1.xpose.msra.mxu0 0.0
        %1198 = vmatprep.subr.mxu0 0.0
        %1199 = vmatpush1.xpose.msra.mxu0 0.0
        %1200 = vmatprep.subr.mxu0 0.0
        %1201 = vmatpush1.xpose.msra.mxu0 0.0
        %1202 = vmatprep.subr.mxu0 0.0
        %1203 = vmatpush1.xpose.msra.mxu0 0.0
        %1204 = vmatprep.subr.mxu0 0.0
        %1205 = vmatpush1.xpose.msra.mxu0 0.0
        %1206 = vmatprep.subr.mxu0 0.0
        %1207 = vmatpush1.xpose.msra.mxu0 0.0
        %1208 = vmatprep.subr.mxu0 0.0
        %1209 = vmatpush1.xpose.msra.mxu0 0.0
        %1210 = vmatprep.subr.mxu0 0.0
        %1211 = vmatpush1.xpose.msra.mxu0 0.0
        %1212 = vmatprep.subr.mxu0 0.0
        %1213 = vmatpush1.xpose.msra.mxu0 0.0
        %1214 = vmatprep.subr.mxu0 0.0
        %1215 = vmatpush1.xpose.msra.mxu0 0.0
        %1216 = vmatprep.subr.mxu0 0.0
        %1217 = vmatpush1.xpose.msra.mxu0 0.0
        %1218 = vmatprep.subr.mxu0 0.0
        %1219 = vmatpush1.xpose.msra.mxu0 0.0
        %1220 = vmatprep.subr.mxu0 0.0
        %1221 = vmatpush1.xpose.msra.mxu0 0.0
        %1222 = vmatprep.subr.mxu0 0.0
        %1223 = vmatpush1.xpose.msra.mxu0 0.0
        %1224 = vmatprep.subr.mxu0 0.0
        %1225 = vmatpush1.xpose.msra.mxu0 0.0
        %1226 = vmatprep.subr.mxu0 0.0
        %1227 = vmatpush1.xpose.msra.mxu0 0.0
        %1228 = vmatprep.subr.mxu0 0.0
        %1229 = vmatpush1.xpose.msra.mxu0 0.0
        %1230 = vmatprep.subr.mxu0 0.0
        %1231 = vmatpush1.xpose.msra.mxu0 0.0
        %1232 = vmatprep.subr.mxu0 0.0
        %1233 = vmatpush1.xpose.msra.mxu0 0.0
        %1234 = vmatprep.subr.mxu0 0.0
        %1235 = vmatpush1.xpose.msra.mxu0 0.0
        %1236 = vmatprep.subr.mxu0 0.0
        %1237 = vmatpush1.xpose.msra.mxu0 0.0
        %1238 = vmatprep.subr.mxu0 0.0
        %1239 = vmatpush1.xpose.msra.mxu0 0.0
        %1240 = vmatprep.subr.mxu0 0.0
        %1241 = vmatpush1.xpose.msra.mxu0 0.0
        %1242 = vmatprep.subr.mxu0 0.0
        %1243 = vmatpush1.xpose.msra.mxu0 0.0
        %1244 = vmatprep.subr.mxu0 0.0
        %1245 = vmatpush1.xpose.msra.mxu0 0.0
        %1246 = vmatprep.mubr.f32.mxu0 0.0
        %1247 = vmatmul.mubr.f32.gmra.mrb[0].mxu0 %v1178
        %v1248 = vpop.f32.mrb[0].mxu0
        %v1249 = vadd.f32 0.0, %v1248
        %v1250 = vpop.f32.mrb[0].mxu0
        %1251 = vdwg.mxu0
        %v1252 = vsel %vm758, %v1249, -inf
        %1253 = vmax.xlane.f32.xlu0 %v1252
        %v1254 = vpop.xlane.xlu0 %1253
        %v1255 = vsub.f32 %v1249, %v1254
        %v1256 = vmul.f32 %v1255, 1.442695
        %v1257 = vpow.pop %v1256
        %v1258 = vsel %vm758, %v1257, 0.0
        %1259 = vadd.xlane.f32.xlu0 %v1258
        %v1260 = vpop.xlane.xlu0 %1259
        %v1261 = vrcp.pop %v1260
        %v1262 = vmul.f32 %v1257, %v1261
        %1263 = vrot.lane.b32.xlu0 %v678, 80
        %v1264 = vpop.permute.xlu0 %1263
        %v1267 = vsel %vm758, %v1262, 0
        %1269 = vmatprep.subr.mxu0 0.0
        %1270 = vmatpush1.msra.mxu0 %v1264
        %1271 = vmatprep.subr.mxu0 0.0
        %1272 = vmatpush1.msra.mxu0 0.0
        %1273 = vmatprep.subr.mxu0 0.0
        %1274 = vmatpush1.msra.mxu0 0.0
        %1275 = vmatprep.subr.mxu0 0.0
        %1276 = vmatpush1.msra.mxu0 0.0
        %1277 = vmatprep.subr.mxu0 0.0
        %1278 = vmatpush1.msra.mxu0 0.0
        %1279 = vmatprep.subr.mxu0 0.0
        %1280 = vmatpush1.msra.mxu0 0.0
        %1281 = vmatprep.subr.mxu0 0.0
        %1282 = vmatpush1.msra.mxu0 0.0
        %1283 = vmatprep.subr.mxu0 0.0
        %1284 = vmatpush1.msra.mxu0 0.0
        %1285 = vmatprep.subr.mxu0 0.0
        %1286 = vmatpush1.msra.mxu0 0.0
        %1287 = vmatprep.subr.mxu0 0.0
        %1288 = vmatpush1.msra.mxu0 0.0
        %1289 = vmatprep.subr.mxu0 0.0
        %1290 = vmatpush1.msra.mxu0 0.0
        %1291 = vmatprep.subr.mxu0 0.0
        %1292 = vmatpush1.msra.mxu0 0.0
        %1293 = vmatprep.subr.mxu0 0.0
        %1294 = vmatpush1.msra.mxu0 0.0
        %1295 = vmatprep.subr.mxu0 0.0
        %1296 = vmatpush1.msra.mxu0 0.0
        %1297 = vmatprep.subr.mxu0 0.0
        %1298 = vmatpush1.msra.mxu0 0.0
        %1299 = vmatprep.subr.mxu0 0.0
        %1300 = vmatpush1.msra.mxu0 0.0
        %1301 = vmatprep.subr.mxu0 0.0
        %1302 = vmatpush1.msra.mxu0 0.0
        %1303 = vmatprep.subr.mxu0 0.0
        %1304 = vmatpush1.msra.mxu0 0.0
        %1305 = vmatprep.subr.mxu0 0.0
        %1306 = vmatpush1.msra.mxu0 0.0
        %1307 = vmatprep.subr.mxu0 0.0
        %1308 = vmatpush1.msra.mxu0 0.0
        %1309 = vmatprep.subr.mxu0 0.0
        %1310 = vmatpush1.msra.mxu0 0.0
        %1311 = vmatprep.subr.mxu0 0.0
        %1312 = vmatpush1.msra.mxu0 0.0
        %1313 = vmatprep.subr.mxu0 0.0
        %1314 = vmatpush1.msra.mxu0 0.0
        %1315 = vmatprep.subr.mxu0 0.0
        %1316 = vmatpush1.msra.mxu0 0.0
        %1317 = vmatprep.subr.mxu0 0.0
        %1318 = vmatpush1.msra.mxu0 0.0
        %1319 = vmatprep.subr.mxu0 0.0
        %1320 = vmatpush1.msra.mxu0 0.0
        %1321 = vmatprep.subr.mxu0 0.0
        %1322 = vmatpush1.msra.mxu0 0.0
        %1323 = vmatprep.subr.mxu0 0.0
        %1324 = vmatpush1.msra.mxu0 0.0
        %1325 = vmatprep.subr.mxu0 0.0
        %1326 = vmatpush1.msra.mxu0 0.0
        %1327 = vmatprep.subr.mxu0 0.0
        %1328 = vmatpush1.msra.mxu0 0.0
        %1329 = vmatprep.subr.mxu0 0.0
        %1330 = vmatpush1.msra.mxu0 0.0
        %1331 = vmatprep.subr.mxu0 0.0
        %1332 = vmatpush1.msra.mxu0 0.0
        %1333 = vmatprep.mubr.f32.mxu0 0.0
        %1334 = vmatmul.mubr.f32.gmra.mrb[0].mxu0 %v1267
        %v1335 = vpop.f32.mrb[0].mxu0
        %v1336 = vadd.f32 0.0, %v1335
        %v1337 = vpop.f32.mrb[0].mxu0
        %1338 = vdwg.mxu0
        %1340 = vrot.lane.b32.xlu0 %v1006, 16
        %v1341 = vpop.permute.xlu0 %1340
        %1344 = vrot.lane.b32.xlu0 %v1171, 32
        %v1345 = vpop.permute.xlu0 %1344
        %1348 = vrot.lane.b32.xlu0 %v1336, 48
        %v1349 = vpop.permute.xlu0 %1348
        %v1351 = vsel %vm681, %v840, %v1341
        %v1352 = vsel %vm451, %v1351, %v1345
        %vm1353 = vcmask 392192
        %v1354 = vsel %vm1353, %v1352, %v1349
        %v1355 = vld [vmem:[%s6] sm:$0xff]
        %v1356 = vld [vmem:[%s6 + $0x8] sm:$0xff]
        %v1357 = vld [vmem:[%s6 + $0x10] sm:$0xff]
        %v1358 = vld [vmem:[%s6 + $0x18] sm:$0xff]
        %v1359 = vld [vmem:[%s6 + $0x20] sm:$0xff]
        %v1360 = vld [vmem:[%s6 + $0x28] sm:$0xff]
        %v1361 = vld [vmem:[%s6 + $0x30] sm:$0xff]
        %v1362 = vld [vmem:[%s6 + $0x38] sm:$0xff]
        %v1363 = vld [vmem:[%s7] sm:$0x1]
        %v1365 = vlaneseq
        %v1366 = vshrl.u32 %v1365, 7
        %v1367 = vsub.s32 0, %v1366
        %v1368 = vrot.slane %v1363, %v1367
        %vm1370 = vcmask 523264
        %v1372 = vsel %vm1370, %v1354, 0
        %1374 = vmatprep.subr.mxu0 0.0
        %1375 = vmatpush1.msra.mxu0 %v1355
        %1376 = vmatprep.subr.mxu0 0.0
        %1377 = vmatpush1.msra.mxu0 %v1356
        %1378 = vmatprep.subr.mxu0 0.0
        %1379 = vmatpush1.msra.mxu0 %v1357
        %1380 = vmatprep.subr.mxu0 0.0
        %1381 = vmatpush1.msra.mxu0 %v1358
        %1382 = vmatprep.subr.mxu0 0.0
        %1383 = vmatpush1.msra.mxu0 %v1359
        %1384 = vmatprep.subr.mxu0 0.0
        %1385 = vmatpush1.msra.mxu0 %v1360
        %1386 = vmatprep.subr.mxu0 0.0
        %1387 = vmatpush1.msra.mxu0 %v1361
        %1388 = vmatprep.subr.mxu0 0.0
        %1389 = vmatpush1.msra.mxu0 %v1362
        %1390 = vmatprep.subr.mxu0 0.0
        %1391 = vmatpush1.msra.mxu0 0.0
        %1392 = vmatprep.subr.mxu0 0.0
        %1393 = vmatpush1.msra.mxu0 0.0
        %1394 = vmatprep.subr.mxu0 0.0
        %1395 = vmatpush1.msra.mxu0 0.0
        %1396 = vmatprep.subr.mxu0 0.0
        %1397 = vmatpush1.msra.mxu0 0.0
        %1398 = vmatprep.subr.mxu0 0.0
        %1399 = vmatpush1.msra.mxu0 0.0
        %1400 = vmatprep.subr.mxu0 0.0
        %1401 = vmatpush1.msra.mxu0 0.0
        %1402 = vmatprep.subr.mxu0 0.0
        %1403 = vmatpush1.msra.mxu0 0.0
        %1404 = vmatprep.subr.mxu0 0.0
        %1405 = vmatpush1.msra.mxu0 0.0
        %1406 = vmatprep.subr.mxu0 0.0
        %1407 = vmatpush1.msra.mxu0 0.0
        %1408 = vmatprep.subr.mxu0 0.0
        %1409 = vmatpush1.msra.mxu0 0.0
        %1410 = vmatprep.subr.mxu0 0.0
        %1411 = vmatpush1.msra.mxu0 0.0
        %1412 = vmatprep.subr.mxu0 0.0
        %1413 = vmatpush1.msra.mxu0 0.0
        %1414 = vmatprep.subr.mxu0 0.0
        %1415 = vmatpush1.msra.mxu0 0.0
        %1416 = vmatprep.subr.mxu0 0.0
        %1417 = vmatpush1.msra.mxu0 0.0
        %1418 = vmatprep.subr.mxu0 0.0
        %1419 = vmatpush1.msra.mxu0 0.0
        %1420 = vmatprep.subr.mxu0 0.0
        %1421 = vmatpush1.msra.mxu0 0.0
        %1422 = vmatprep.subr.mxu0 0.0
        %1423 = vmatpush1.msra.mxu0 0.0
        %1424 = vmatprep.subr.mxu0 0.0
        %1425 = vmatpush1.msra.mxu0 0.0
        %1426 = vmatprep.subr.mxu0 0.0
        %1427 = vmatpush1.msra.mxu0 0.0
        %1428 = vmatprep.subr.mxu0 0.0
        %1429 = vmatpush1.msra.mxu0 0.0
        %1430 = vmatprep.subr.mxu0 0.0
        %1431 = vmatpush1.msra.mxu0 0.0
        %1432 = vmatprep.subr.mxu0 0.0
        %1433 = vmatpush1.msra.mxu0 0.0
        %1434 = vmatprep.subr.mxu0 0.0
        %1435 = vmatpush1.msra.mxu0 0.0
        %1436 = vmatprep.subr.mxu0 0.0
        %1437 = vmatpush1.msra.mxu0 0.0
        %1438 = vmatprep.mubr.f32.mxu0 0.0
        %1439 = vmatmul.mubr.f32.gmra.mrb[0].mxu0 %v1372
        %v1440 = vpop.f32.mrb[0].mxu0
        %v1441 = vadd.f32 %v1368, %v1440
        %v1442 = vpop.f32.mrb[0].mxu0
        %1443 = vdwg.mxu0
        %v1444 = vadd.f32 %v1441, %v446
        %v1445 = vsel %vm451, %v1444, 0.0
        %1446 = vadd.xlane.f32.xlu0 %v1445
        %v1447 = vpop.xlane.xlu0 %1446
        %v1448 = vrcp.pop 32.0
        %v1449 = vmul.f32 %v1447, %v1448
        %v1450 = vsub.f32 %v1444, %v1449
        %v1451 = vmul.f32 %v1450, %v1450
        %v1452 = vsel %vm451, %v1451, 0.0
        %1453 = vadd.xlane.f32.xlu0 %v1452
        %v1454 = vpop.xlane.xlu0 %1453
        %v1455 = vmul.f32 %v1454, %v1448
        %v1456 = vadd.f32 %v1455, 1e-05
        %v1457 = vrsqrt.pop %v1456
        %v1458 = vmul.f32 %v1450, %v1457
        %v1459 = vld [vmem:[%s8] sm:$0x1]
        %v1461 = vlaneseq
        %v1462 = vshrl.u32 %v1461, 7
        %v1463 = vsub.s32 0, %v1462
        %v1464 = vrot.slane %v1459, %v1463
        %v1466 = vmul.f32 %v1458, %v1464
        %v1467 = vld [vmem:[%s9] sm:$0x1]
        %v1469 = vlaneseq
        %v1470 = vshrl.u32 %v1469, 7
        %v1471 = vsub.s32 0, %v1470
        %v1472 = vrot.slane %v1467, %v1471
        %v1474 = vadd.f32 %v1466, %v1472
        %1475 = vst.msk [vmem:[%s445] sm:$0xff] %vm451, %v1474
        %s1476 = sand.u32 %s263, 1
        %s1477 = scalar_lea.sflag [#allocation4], %s1476
        %s1478 = sand.u32 %s263, 1
        %s1479 = smul.addr %s1478, 8
        %s1480 = scalar_lea.vmem [#allocation8], %s1479
        // Predicated region
        $region73: #{tpu_custom_call.1} parent=59 // pred_check
          %p1481 = pneg %p273
        $region74: #{tpu_custom_call.1} parent=59 // pred_check_branch
          %1483 = sbr.rel (%p1481) target = $region76
        $region75: #{tpu_custom_call.1} parent=59 // pred_region
          %s1485 = ssub.s32 128, 128
          %1486 = vsyncadd %s1477, %s1485
          %s1487 = smul.addr %s30, 128
          %s1488 = scalar_lea.hbm %s10, %s1487
          %s1490 = sshll.u32 %s1480, 4
          %s1491 = int_to_ptr.vmem [resolvable:$true] %s1490
          %1493 = dma.vmem_to_hbm [thread:$0]  %s1491, 128, %s1488, %s1477
        $region76: #{tpu_custom_call.1} parent=59 // pred_fallthru
          _
      $region60: #{tpu_custom_call.1} parent=5 // pred_fallthru
        _
      %p1494 = scmp.le.s32.totalorder 2, %s25
      // Predicated region
      $region77: #{tpu_custom_call.1} parent=5 // pred_check
        %p1495 = pneg %p1494
      $region78: #{tpu_custom_call.1} parent=5 // pred_check_branch
        %1497 = sbr.rel (%p1495) target = $region80
      $region79: #{tpu_custom_call.1} parent=5 // pred_region
        %s1498 = ssub.s32 %s25, 2
        // Predicated region
        $region81: #{tpu_custom_call.1} parent=79 // pred_check
          %p1499 = pneg %p279
        $region82: #{tpu_custom_call.1} parent=79 // pred_check_branch
          %1501 = sbr.rel (%p1499) target = $region84
        $region83: #{tpu_custom_call.1} parent=79 // pred_region
          %s1502 = sand.u32 %s264, 1
          %s1503 = scalar_lea.sflag [#allocation4], %s1502
          %s1504 = sand.u32 %s264, 1
          %s1505 = smul.addr %s1504, 8
          %s1506 = scalar_lea.vmem [#allocation8], %s1505
          %1507 = dma.done %s1503, 128
        $region84: #{tpu_custom_call.1} parent=79 // pred_fallthru
          _
      $region80: #{tpu_custom_call.1} parent=5 // pred_fallthru
        _
    $region6: #{tpu_custom_call.1} parent=1 // loop_footer
      %s29 = sadd.s32 1, %s25
    $region7: #{tpu_custom_call.1} parent=1 // loop_footer_branch
      %24 = sbr.rel target = $region3
    $region8: #{tpu_custom_call.1} parent=1 // loop_exit
      _
    %1508 = vsyncpa [#allocation3], 1
    %s1509 = scalar_lea.sflag [#allocation3], 1
    %1510 = vsyncpa %s1509, 1
    %1511 = vsyncpa [#allocation6], 1
    %s1512 = scalar_lea.sflag [#allocation6], 1
    %1513 = vsyncpa %s1512, 1
    %1514 = vsyncpa [#allocation4], 1
    %s1515 = scalar_lea.sflag [#allocation4], 1
    %1516 = vsyncpa %s1515, 1

</llo_original>
